<compile_context>
chip_gen: v7x
topology: tpu7x:2x2x1
jax: 0.10.0
libtpu: 0.0.40
codegen_flags: <defaults>
</compile_context>

<pallas_src>
import math

import jax
import jax.numpy as jnp
from jax import lax
from jax.experimental import pallas as pl
from jax.experimental.pallas import tpu as pltpu


_VMEM_LIMIT = 48 * 1024 * 1024  # legal on v5e/v6e (128 MiB) and v7x (64 MiB)


def _round_up(x, m):
    return (x + m - 1) // m * m


# ---------------------------------------------------------------------------
# Kernel 1: stride-1 KxK conv, "wide" tap-accumulation layout (no im2col in
# HBM).  One grid step = one image.  x_ref is the spatially padded image
# flattened to [(Hp+1)*Wp_al, Cin].  For each kj the k row taps (ki=0..k-1)
# are concatenated channel-wise into a [Mw, k*Cin] operand and hit the MXU
# once against the matching [k*Cin, Cout] weight slice -> only k MXU passes /
# accumulator RMWs instead of k*k.  The epilogue is one vectorized
# reshape/slice + shift (+residual) (+ReLU) + store.
# ---------------------------------------------------------------------------
def _make_s1_conv_kernel(k, wp_al, oh, ow, cout, relu, has_res):
    mw = oh * wp_al

    def kernel(x_ref, w_ref, shift_ref, *rest):
        if has_res:
            res_ref, o_ref, acc_ref = rest
        else:
            o_ref, acc_ref = rest

        for kj in range(k):
            taps = [x_ref[pl.ds(ki * wp_al + kj, mw), :] for ki in range(k)]
            a = jnp.concatenate(taps, axis=-1)                 # [Mw, k*Cin] bf16
            contrib = jnp.dot(a, w_ref[kj],                    # [k*Cin, Cout] bf16
                              preferred_element_type=jnp.float32)
            if kj == 0:
                acc_ref[...] = contrib
            else:
                acc_ref[...] += contrib

        y = acc_ref[...] + shift_ref[...]                      # [Mw, Cout] f32
        y = y.reshape(oh, wp_al, cout)[:, :ow, :]              # drop garbage cols
        if has_res:
            y = y + res_ref[...].astype(jnp.float32)
        if relu:
            y = jnp.maximum(y, 0.0)
        o_ref[...] = y.astype(o_ref.dtype)

    return kernel


def conv_s1_wide(x, w, shift, *, relu, residual=None):
    """Stride-1 'same' KxK conv with folded-BN shift (+residual) (+ReLU).
    x: [B,H,W,Cin] bf16; w: [k,k,Cin,Cout] bf16 (BN scale already folded);
    shift: [Cout] f32.  Returns [B,H,W,Cout] bf16."""
    b, h, wdim, cin = x.shape
    k = w.shape[0]
    assert k % 2 == 1
    p = (k - 1) // 2
    cout = w.shape[-1]
    oh, ow = h, wdim
    hp, wp = h + 2 * p, wdim + 2 * p
    wp_al = _round_up(wp, 8)
    mw = oh * wp_al
    # Single fused pad: one extra bottom row keeps the last tap slab in bounds
    # and (wp_al % 8 == 0) keeps the flattened row count a multiple of 8.
    nrows = (hp + 1) * wp_al
    xp = jnp.pad(x, ((0, 0), (p, p + 1), (p, p + wp_al - wp), (0, 0)))
    xf = xp.reshape(b, nrows, cin)

    # kj-major weight layout: wf[kj] is the [k*Cin, Cout] matrix whose K rows
    # are the ki=0..k-1 taps concatenated channel-wise (matches the concat).
    wf = jnp.transpose(w, (1, 0, 2, 3)).reshape(k, k * cin, cout)
    shift2 = shift.reshape(1, cout)

    has_res = residual is not None
    ops = [xf, wf, shift2]
    in_specs = [
        pl.BlockSpec((None, nrows, cin), lambda i: (i, 0, 0)),
        pl.BlockSpec((k, k * cin, cout), lambda i: (0, 0, 0)),
        pl.BlockSpec((1, cout), lambda i: (0, 0)),
    ]
    if has_res:
        ops.append(residual)
        in_specs.append(pl.BlockSpec((None, oh, ow, cout), lambda i: (i, 0, 0, 0)))

    out = pl.pallas_call(
        _make_s1_conv_kernel(k, wp_al, oh, ow, cout, relu, has_res),
        out_shape=jax.ShapeDtypeStruct((b, oh, ow, cout), jnp.bfloat16),
        grid=(b,),
        in_specs=in_specs,
        out_specs=pl.BlockSpec((None, oh, ow, cout), lambda i: (i, 0, 0, 0)),
        scratch_shapes=[pltpu.VMEM((mw, cout), jnp.float32)],
        compiler_params=pltpu.CompilerParams(
            dimension_semantics=("parallel",),
            vmem_limit_bytes=_VMEM_LIMIT,
        ),
    )(*ops)
    return out


# ---------------------------------------------------------------------------
# Kernel 2: im2col + fused matmul / shift (/residual) (/ReLU).  Used for the
# 7 strided convs (conv1 7x7/s2, 3x3/s2, 1x1/s2 downsamples) and for
# small-spatial stride-1 stages (layer4) where the wide layout overcomputes.
# No K padding (full-K blocks are legal); M tile divides M (no pad / slice).
# ---------------------------------------------------------------------------
def _make_im2col_kernel(relu, has_res):
    def kernel(a_ref, w_ref, shift_ref, *rest):
        if has_res:
            res_ref, o_ref = rest
        else:
            (o_ref,) = rest
        acc = jnp.dot(a_ref[...], w_ref[...], preferred_element_type=jnp.float32)
        y = acc + shift_ref[...]
        if has_res:
            y = y + res_ref[...].astype(jnp.float32)
        if relu:
            y = jnp.maximum(y, 0.0)
        o_ref[...] = y.astype(o_ref.dtype)
    return kernel


def _im2col(x, kh, kw, stride, pad):
    b, h, w, c = x.shape
    xp = jnp.pad(x, ((0, 0), (pad, pad), (pad, pad), (0, 0)))
    oh = (h + 2 * pad - kh) // stride + 1
    ow = (w + 2 * pad - kw) // stride + 1
    cols = []
    for i in range(kh):
        for j in range(kw):
            cols.append(xp[:, i:i + stride * oh:stride, j:j + stride * ow:stride, :])
    patches = jnp.concatenate(cols, axis=-1)   # [B, OH, OW, kh*kw*C]
    return patches, oh, ow


def _choose_tm(m):
    """Row tile that divides M (multiple of 8) -> no M padding, no out[:m] copy."""
    if m <= 1024:
        return m, m                      # single full-extent block (always legal)
    for tm in range(512, 7, -8):
        if m % tm == 0:
            return tm, m
    return 512, _round_up(m, 512)        # rare fallback: pad M


def conv_im2col(x, w, shift, *, stride, pad, relu, residual=None):
    b, h, wdim, cin = x.shape
    kh, kw, _, cout = w.shape
    patches, oh, ow = _im2col(x, kh, kw, stride, pad)
    m = b * oh * ow
    kdim = kh * kw * cin
    a = patches.reshape(m, kdim)         # no K padding: full-K blocks are legal
    wm = w.reshape(kdim, cout)
    has_res = residual is not None
    res_flat = residual.reshape(m, cout) if has_res else None

    tm, m_pad = _choose_tm(m)
    if m_pad != m:
        a = jnp.pad(a, ((0, m_pad - m), (0, 0)))
        if has_res:
            res_flat = jnp.pad(res_flat, ((0, m_pad - m), (0, 0)))

    ops = [a, wm, shift.reshape(1, cout)]
    in_specs = [
        pl.BlockSpec((tm, kdim), lambda i: (i, 0)),
        pl.BlockSpec((kdim, cout), lambda i: (0, 0)),
        pl.BlockSpec((1, cout), lambda i: (0, 0)),
    ]
    if has_res:
        ops.append(res_flat)
        in_specs.append(pl.BlockSpec((tm, cout), lambda i: (i, 0)))

    out = pl.pallas_call(
        _make_im2col_kernel(relu, has_res),
        out_shape=jax.ShapeDtypeStruct((m_pad, cout), jnp.bfloat16),
        grid=(m_pad // tm,),
        in_specs=in_specs,
        out_specs=pl.BlockSpec((tm, cout), lambda i: (i, 0)),
        compiler_params=pltpu.CompilerParams(
            dimension_semantics=("parallel",),
            vmem_limit_bytes=_VMEM_LIMIT,
        ),
    )(*ops)
    if m_pad != m:
        out = out[:m]
    return out.reshape(b, oh, ow, cout)


# ---------------------------------------------------------------------------
# Kernel 3: MaxPool2d(3, stride=2, padding=1), separable, bf16 reductions.
# The wrapper splits the stride-2 column phases (even/odd padded columns).
# ---------------------------------------------------------------------------
def _make_maxpool_kernel(oh, ow):
    def kernel(xe_ref, xo_ref, o_ref):
        def row_body(r, carry):
            h0 = 2 * r
            ce = jnp.maximum(jnp.maximum(xe_ref[h0], xe_ref[h0 + 1]), xe_ref[h0 + 2])
            co = jnp.maximum(jnp.maximum(xo_ref[h0], xo_ref[h0 + 1]), xo_ref[h0 + 2])
            y = jnp.maximum(jnp.maximum(ce[0:ow, :], co[0:ow, :]), ce[1:ow + 1, :])
            o_ref[r] = y.astype(o_ref.dtype)
            return carry
        lax.fori_loop(0, oh, row_body, 0)
    return kernel


def maxpool3x3_s2(x):
    b, h, w, c = x.shape
    hp, wp = h + 2, w + 2
    oh = (hp - 3) // 2 + 1
    ow = (wp - 3) // 2 + 1
    xp = jnp.pad(x, ((0, 0), (1, 1), (1, 1), (0, 0)), constant_values=-jnp.inf)
    xe = xp[:, :, 0::2, :]   # even padded columns  [B, Hp, ceil(Wp/2), C]
    xo = xp[:, :, 1::2, :]   # odd  padded columns  [B, Hp, floor(Wp/2), C]
    we2, wo2 = xe.shape[2], xo.shape[2]

    return pl.pallas_call(
        _make_maxpool_kernel(oh, ow),
        out_shape=jax.ShapeDtypeStruct((b, oh, ow, c), jnp.bfloat16),
        grid=(b,),
        in_specs=[
            pl.BlockSpec((None, hp, we2, c), lambda i: (i, 0, 0, 0)),
            pl.BlockSpec((None, hp, wo2, c), lambda i: (i, 0, 0, 0)),
        ],
        out_specs=pl.BlockSpec((None, oh, ow, c), lambda i: (i, 0, 0, 0)),
        compiler_params=pltpu.CompilerParams(
            dimension_semantics=("parallel",),
            vmem_limit_bytes=_VMEM_LIMIT,
        ),
    )(xe, xo)


# ---------------------------------------------------------------------------
# Parameter init (deterministic; shapes follow torchvision resnet34).
# Eval-mode BatchNorm is folded: scale into the conv weights, shift kept.
# ---------------------------------------------------------------------------
_RESNET34_LAYERS = [(3, 64), (4, 128), (6, 256), (3, 512)]


def _conv_bn_init(key, kh, kw, cin, cout, eps=1e-5):
    k1, k2, k3, k4, k5 = jax.random.split(key, 5)
    fan_out = cout * kh * kw
    std = math.sqrt(2.0 / fan_out)  # kaiming_normal(fan_out) like torchvision
    w = std * jax.random.normal(k1, (kh, kw, cin, cout), dtype=jnp.float32)
    gamma = 1.0 + 0.1 * jax.random.normal(k2, (cout,), dtype=jnp.float32)
    beta = 0.1 * jax.random.normal(k3, (cout,), dtype=jnp.float32)
    mean = 0.1 * jax.random.normal(k4, (cout,), dtype=jnp.float32)
    var = 1.0 + 0.1 * jnp.abs(jax.random.normal(k5, (cout,), dtype=jnp.float32))
    scale = gamma / jnp.sqrt(var + eps)
    shift = beta - mean * scale
    w_folded = (w * scale[None, None, None, :]).astype(jnp.bfloat16)
    return w_folded, shift.astype(jnp.float32)


def init_params(key, input_channel=3):
    counter = [0]

    def nk():
        counter[0] += 1
        return jax.random.fold_in(key, counter[0])

    params = {}
    params["conv1_w"], params["conv1_b"] = _conv_bn_init(nk(), 7, 7, input_channel, 64)

    layers = []
    in_ch = 64
    for layer_idx, (n_blocks, out_ch) in enumerate(_RESNET34_LAYERS):
        blocks = []
        for blk_idx in range(n_blocks):
            stride = 2 if (layer_idx > 0 and blk_idx == 0) else 1
            blk = {}
            blk["w1"], blk["b1"] = _conv_bn_init(nk(), 3, 3, in_ch, out_ch)
            blk["w2"], blk["b2"] = _conv_bn_init(nk(), 3, 3, out_ch, out_ch)
            if stride != 1 or in_ch != out_ch:
                blk["wd"], blk["bd"] = _conv_bn_init(nk(), 1, 1, in_ch, out_ch)
            blocks.append(blk)
            in_ch = out_ch
        layers.append(blocks)
    params["layers"] = layers
    return params


# ---------------------------------------------------------------------------
# Forward pass: Sequential(conv1, bn1, relu, maxpool, layer1..layer4)
# ---------------------------------------------------------------------------
def _use_wide_layout(h, w):
    """Wide tap-accumulation pays off only when most aligned columns are valid
    output (layers 1-3 at real resolutions); otherwise im2col wins (layer4)."""
    wp_al = _round_up(w + 2, 8)
    return w >= 12 and 4 * w >= 3 * wp_al


def resnet34_forward(params, x_nchw):
    x = jnp.transpose(x_nchw, (0, 2, 3, 1)).astype(jnp.bfloat16)   # NCHW -> NHWC
    x = conv_im2col(x, params["conv1_w"], params["conv1_b"], stride=2, pad=3, relu=True)
    x = maxpool3x3_s2(x)
    for layer_idx, layer in enumerate(params["layers"]):
        for blk_idx, blk in enumerate(layer):
            stride = 2 if (layer_idx > 0 and blk_idx == 0) else 1
            identity = x
            if stride == 1 and _use_wide_layout(x.shape[1], x.shape[2]):
                out = conv_s1_wide(x, blk["w1"], blk["b1"], relu=True)
            else:
                out = conv_im2col(x, blk["w1"], blk["b1"], stride=stride, pad=1,
                                  relu=True)
            if "wd" in blk:
                identity = conv_im2col(x, blk["wd"], blk["bd"], stride=stride, pad=0,
                                       relu=False)
            # x = relu(bn2(conv2(out)) + identity), residual fused in-kernel.
            if _use_wide_layout(out.shape[1], out.shape[2]):
                x = conv_s1_wide(out, blk["w2"], blk["b2"], relu=True,
                                 residual=identity)
            else:
                x = conv_im2col(out, blk["w2"], blk["b2"], stride=1, pad=1,
                                relu=True, residual=identity)
    return jnp.transpose(x, (0, 3, 1, 2)).astype(jnp.float32)      # NHWC -> NCHW


# ---------------------------------------------------------------------------
# Pure-JAX f32 reference (same folded weights) for a tolerance check.
# ---------------------------------------------------------------------------
def _reference_forward(params, x_nchw):
    def conv(x, w, shift, stride, pad, relu, residual=None):
        y = lax.conv_general_dilated(
            x, w.astype(jnp.float32), (stride, stride),
            [(pad, pad), (pad, pad)],
            dimension_numbers=("NHWC", "HWIO", "NHWC"))
        y = y + shift.reshape(1, 1, 1, -1)
        if residual is not None:
            y = y + residual
        if relu:
            y = jnp.maximum(y, 0.0)
        return y

    x = jnp.transpose(x_nchw, (0, 2, 3, 1)).astype(jnp.float32)
    x = conv(x, params["conv1_w"], params["conv1_b"], 2, 3, True)
    x = lax.reduce_window(x, -jnp.inf, lax.max, (1, 3, 3, 1), (1, 2, 2, 1),
                          [(0, 0), (1, 1), (1, 1), (0, 0)])
    for layer_idx, layer in enumerate(params["layers"]):
        for blk_idx, blk in enumerate(layer):
            stride = 2 if (layer_idx > 0 and blk_idx == 0) else 1
            identity = x
            out = conv(x, blk["w1"], blk["b1"], stride, 1, True)
            if "wd" in blk:
                identity = conv(x, blk["wd"], blk["bd"], stride, 0, False)
            x = conv(out, blk["w2"], blk["b2"], 1, 1, True, residual=identity)
    return jnp.transpose(x, (0, 3, 1, 2))


if __name__ == "__main__":
    key = jax.random.PRNGKey(0)

    # --- direct check of the wide (tap-concat) stride-1 conv kernel, which the
    # tiny end-to-end shapes below route around (they use the im2col path). ---
    kc = jax.random.fold_in(key, 777)
    xs = jax.random.normal(jax.random.fold_in(kc, 1), (1, 14, 14, 32), jnp.float32)
    ws = 0.05 * jax.random.normal(jax.random.fold_in(kc, 2), (3, 3, 32, 64),
                                  jnp.float32)
    ss = 0.1 * jax.random.normal(jax.random.fold_in(kc, 3), (64,), jnp.float32)
    rs = jax.random.normal(jax.random.fold_in(kc, 4), (1, 14, 14, 64), jnp.float32)
    xs_b = xs.astype(jnp.bfloat16).astype(jnp.float32)
    ws_b = ws.astype(jnp.bfloat16).astype(jnp.float32)
    rs_b = rs.astype(jnp.bfloat16).astype(jnp.float32)
    s1_fn = jax.jit(lambda a, b, c, d: conv_s1_wide(a, b, c, relu=True, residual=d))
    got = jax.block_until_ready(
        s1_fn(xs.astype(jnp.bfloat16), ws.astype(jnp.bfloat16), ss,
              rs.astype(jnp.bfloat16)))
    want = lax.conv_general_dilated(xs_b, ws_b, (1, 1), [(1, 1), (1, 1)],
                                    dimension_numbers=("NHWC", "HWIO", "NHWC"))
    want = jnp.maximum(want + ss.reshape(1, 1, 1, -1) + rs_b, 0.0)
    err_s1 = float(jnp.max(jnp.abs(got.astype(jnp.float32) - want)) /
                   (jnp.max(jnp.abs(want)) + 1e-6))
    assert err_s1 < 0.02, err_s1

    # --- end-to-end ResNet34 at small shapes ---
    input_channel = 4
    x = jax.random.normal(jax.random.fold_in(key, 12345),
                          (2, input_channel, 16, 16), dtype=jnp.float32)
    params = init_params(key, input_channel=input_channel)

    fwd = jax.jit(resnet34_forward)
    out = jax.block_until_ready(fwd(params, x))

    expected = (2, 512, int(math.ceil(16 / 32.0)), int(math.ceil(16 / 32.0)))
    assert out.shape == expected, (out.shape, expected)
    assert bool(jnp.all(jnp.isfinite(out)))

    ref = jax.block_until_ready(jax.jit(_reference_forward)(params, x))
    err = float(jnp.max(jnp.abs(out - ref)) / (jnp.max(jnp.abs(ref)) + 1e-6))
    assert err < 0.15, err   # bf16 activations vs f32 reference
    print("KERNEL_OK")
</pallas_src>

<mosaic_0001>
module attributes {stable_mosaic.version = 11 : i64} {
  func.func @kernel(%arg0: i32, %arg1: memref<1x272x32xbf16, #tpu.memory_space<vmem>>, %arg2: memref<3x96x64xbf16, #tpu.memory_space<vmem>>, %arg3: memref<1x64xf32, #tpu.memory_space<vmem>>, %arg4: memref<1x14x14x64xbf16, #tpu.memory_space<vmem>>, %arg5: memref<1x14x14x64xbf16, #tpu.memory_space<vmem>>, %arg6: memref<224x64xf32, #tpu.memory_space<vmem>>) attributes {dimension_semantics = [#tpu.dimension_semantics<parallel>], iteration_bounds = array<i64: 1>, scalar_prefetch = 0 : i64, scratch_operands = 1 : i64, tpu.core_type = #tpu.core_type<tc>, window_params = [{transform_indices = @transform_0, window_bounds = array<i64: 1, 272, 32>}, {pipeline_mode = #tpu.pipeline_mode<synchronous>, transform_indices = @transform_1, window_bounds = array<i64: 3, 96, 64>}, {pipeline_mode = #tpu.pipeline_mode<synchronous>, transform_indices = @transform_2, window_bounds = array<i64: 1, 64>}, {transform_indices = @transform_3, window_bounds = array<i64: 1, 14, 14, 64>}, {transform_indices = @transform_4, window_bounds = array<i64: 1, 14, 14, 64>}]} {
    %c0 = arith.constant 0 : index
    %c0_0 = arith.constant 0 : index
    %c0_1 = arith.constant 0 : index
    %0 = vector.load %arg1[%c0, %c0_0, %c0_1] : memref<1x272x32xbf16, #tpu.memory_space<vmem>>, vector<1x224x32xbf16>
    %1 = vector.shape_cast %0 : vector<1x224x32xbf16> to vector<224x32xbf16>
    %c0_2 = arith.constant 0 : index
    %c16 = arith.constant 16 : index
    %c0_3 = arith.constant 0 : index
    %2 = vector.load %arg1[%c0_2, %c16, %c0_3] : memref<1x272x32xbf16, #tpu.memory_space<vmem>>, vector<1x224x32xbf16>
    %3 = vector.shape_cast %2 : vector<1x224x32xbf16> to vector<224x32xbf16>
    %c0_4 = arith.constant 0 : index
    %c32 = arith.constant 32 : index
    %c0_5 = arith.constant 0 : index
    %4 = vector.load %arg1[%c0_4, %c32, %c0_5] : memref<1x272x32xbf16, #tpu.memory_space<vmem>>, vector<1x224x32xbf16>
    %5 = vector.shape_cast %4 : vector<1x224x32xbf16> to vector<224x32xbf16>
    %6 = tpu.concatenate %1, %3, %5 in 1 : vector<224x32xbf16>, vector<224x32xbf16>, vector<224x32xbf16> -> vector<224x96xbf16>
    %c0_6 = arith.constant 0 : index
    %c0_7 = arith.constant 0 : index
    %c0_8 = arith.constant 0 : index
    %7 = vector.load %arg2[%c0_6, %c0_7, %c0_8] : memref<3x96x64xbf16, #tpu.memory_space<vmem>>, vector<1x96x64xbf16>
    %8 = vector.shape_cast %7 : vector<1x96x64xbf16> to vector<96x64xbf16>
    %cst = arith.constant dense<0.000000e+00> : vector<224x64xf32>
    %9 = tpu.matmul %6, %8, %cst {dimension_numbers = #tpu.dot_dimension_numbers<[1], [0], [0], [1], [0, 0, 1, 1], [], []>} : vector<224x96xbf16>, vector<96x64xbf16>, vector<224x64xf32> -> vector<224x64xf32>
    %c0_9 = arith.constant 0 : index
    %c0_10 = arith.constant 0 : index
    %10 = vector.load %arg6[%c0_9, %c0_10] : memref<224x64xf32, #tpu.memory_space<vmem>>, vector<224x64xf32>
    tpu.vector_store %arg6[%c0_9, %c0_10], %9 {strides = array<i32>} : memref<224x64xf32, #tpu.memory_space<vmem>>, vector<224x64xf32>,
    %c0_11 = arith.constant 0 : index
    %c1 = arith.constant 1 : index
    %c0_12 = arith.constant 0 : index
    %11 = vector.load %arg1[%c0_11, %c1, %c0_12] : memref<1x272x32xbf16, #tpu.memory_space<vmem>>, vector<1x224x32xbf16>
    %12 = vector.shape_cast %11 : vector<1x224x32xbf16> to vector<224x32xbf16>
    %c0_13 = arith.constant 0 : index
    %c17 = arith.constant 17 : index
    %c0_14 = arith.constant 0 : index
    %13 = vector.load %arg1[%c0_13, %c17, %c0_14] : memref<1x272x32xbf16, #tpu.memory_space<vmem>>, vector<1x224x32xbf16>
    %14 = vector.shape_cast %13 : vector<1x224x32xbf16> to vector<224x32xbf16>
    %c0_15 = arith.constant 0 : index
    %c33 = arith.constant 33 : index
    %c0_16 = arith.constant 0 : index
    %15 = vector.load %arg1[%c0_15, %c33, %c0_16] : memref<1x272x32xbf16, #tpu.memory_space<vmem>>, vector<1x224x32xbf16>
    %16 = vector.shape_cast %15 : vector<1x224x32xbf16> to vector<224x32xbf16>
    %17 = tpu.concatenate %12, %14, %16 in 1 : vector<224x32xbf16>, vector<224x32xbf16>, vector<224x32xbf16> -> vector<224x96xbf16>
    %c1_17 = arith.constant 1 : index
    %c0_18 = arith.constant 0 : index
    %c0_19 = arith.constant 0 : index
    %18 = vector.load %arg2[%c1_17, %c0_18, %c0_19] : memref<3x96x64xbf16, #tpu.memory_space<vmem>>, vector<1x96x64xbf16>
    %19 = vector.shape_cast %18 : vector<1x96x64xbf16> to vector<96x64xbf16>
    %cst_20 = arith.constant dense<0.000000e+00> : vector<224x64xf32>
    %20 = tpu.matmul %17, %19, %cst_20 {dimension_numbers = #tpu.dot_dimension_numbers<[1], [0], [0], [1], [0, 0, 1, 1], [], []>} : vector<224x96xbf16>, vector<96x64xbf16>, vector<224x64xf32> -> vector<224x64xf32>
    %c0_21 = arith.constant 0 : index
    %c0_22 = arith.constant 0 : index
    %21 = vector.load %arg6[%c0_21, %c0_22] : memref<224x64xf32, #tpu.memory_space<vmem>>, vector<224x64xf32>
    %22 = arith.addf %21, %20 : vector<224x64xf32>
    %c0_23 = arith.constant 0 : index
    %c0_24 = arith.constant 0 : index
    %23 = vector.load %arg6[%c0_23, %c0_24] : memref<224x64xf32, #tpu.memory_space<vmem>>, vector<224x64xf32>
    tpu.vector_store %arg6[%c0_23, %c0_24], %22 {strides = array<i32>} : memref<224x64xf32, #tpu.memory_space<vmem>>, vector<224x64xf32>,
    %c0_25 = arith.constant 0 : index
    %c2 = arith.constant 2 : index
    %c0_26 = arith.constant 0 : index
    %24 = vector.load %arg1[%c0_25, %c2, %c0_26] : memref<1x272x32xbf16, #tpu.memory_space<vmem>>, vector<1x224x32xbf16>
    %25 = vector.shape_cast %24 : vector<1x224x32xbf16> to vector<224x32xbf16>
    %c0_27 = arith.constant 0 : index
    %c18 = arith.constant 18 : index
    %c0_28 = arith.constant 0 : index
    %26 = vector.load %arg1[%c0_27, %c18, %c0_28] : memref<1x272x32xbf16, #tpu.memory_space<vmem>>, vector<1x224x32xbf16>
    %27 = vector.shape_cast %26 : vector<1x224x32xbf16> to vector<224x32xbf16>
    %c0_29 = arith.constant 0 : index
    %c34 = arith.constant 34 : index
    %c0_30 = arith.constant 0 : index
    %28 = vector.load %arg1[%c0_29, %c34, %c0_30] : memref<1x272x32xbf16, #tpu.memory_space<vmem>>, vector<1x224x32xbf16>
    %29 = vector.shape_cast %28 : vector<1x224x32xbf16> to vector<224x32xbf16>
    %30 = tpu.concatenate %25, %27, %29 in 1 : vector<224x32xbf16>, vector<224x32xbf16>, vector<224x32xbf16> -> vector<224x96xbf16>
    %c2_31 = arith.constant 2 : index
    %c0_32 = arith.constant 0 : index
    %c0_33 = arith.constant 0 : index
    %31 = vector.load %arg2[%c2_31, %c0_32, %c0_33] : memref<3x96x64xbf16, #tpu.memory_space<vmem>>, vector<1x96x64xbf16>
    %32 = vector.shape_cast %31 : vector<1x96x64xbf16> to vector<96x64xbf16>
    %cst_34 = arith.constant dense<0.000000e+00> : vector<224x64xf32>
    %33 = tpu.matmul %30, %32, %cst_34 {dimension_numbers = #tpu.dot_dimension_numbers<[1], [0], [0], [1], [0, 0, 1, 1], [], []>} : vector<224x96xbf16>, vector<96x64xbf16>, vector<224x64xf32> -> vector<224x64xf32>
    %c0_35 = arith.constant 0 : index
    %c0_36 = arith.constant 0 : index
    %34 = vector.load %arg6[%c0_35, %c0_36] : memref<224x64xf32, #tpu.memory_space<vmem>>, vector<224x64xf32>
    %35 = arith.addf %34, %33 : vector<224x64xf32>
    %c0_37 = arith.constant 0 : index
    %c0_38 = arith.constant 0 : index
    %36 = vector.load %arg6[%c0_37, %c0_38] : memref<224x64xf32, #tpu.memory_space<vmem>>, vector<224x64xf32>
    tpu.vector_store %arg6[%c0_37, %c0_38], %35 {strides = array<i32>} : memref<224x64xf32, #tpu.memory_space<vmem>>, vector<224x64xf32>,
    %c0_39 = arith.constant 0 : index
    %c0_40 = arith.constant 0 : index
    %37 = vector.load %arg6[%c0_39, %c0_40] : memref<224x64xf32, #tpu.memory_space<vmem>>, vector<224x64xf32>
    %c0_41 = arith.constant 0 : index
    %c0_42 = arith.constant 0 : index
    %38 = vector.load %arg3[%c0_41, %c0_42] : memref<1x64xf32, #tpu.memory_space<vmem>>, vector<1x64xf32>
    %39 = vector.broadcast %38 : vector<1x64xf32> to vector<224x64xf32>
    %40 = arith.addf %37, %39 : vector<224x64xf32>
    %41 = vector.shape_cast %40 : vector<224x64xf32> to vector<14x16x64xf32>
    %42 = vector.extract_strided_slice %41 {offsets = [0, 0, 0], sizes = [14, 14, 64], strides = [1, 1, 1]} : vector<14x16x64xf32> to vector<14x14x64xf32>
    %c0_43 = arith.constant 0 : index
    %c0_44 = arith.constant 0 : index
    %c0_45 = arith.constant 0 : index
    %c0_46 = arith.constant 0 : index
    %43 = vector.load %arg4[%c0_43, %c0_44, %c0_45, %c0_46] : memref<1x14x14x64xbf16, #tpu.memory_space<vmem>>, vector<1x14x14x64xbf16>
    %44 = vector.shape_cast %43 : vector<1x14x14x64xbf16> to vector<14x14x64xbf16>
    %45 = arith.extf %44 : vector<14x14x64xbf16> to vector<14x14x64xf32>
    %46 = arith.addf %42, %45 : vector<14x14x64xf32>
    %cst_47 = arith.constant 0.000000e+00 : f32
    %47 = vector.broadcast %cst_47 : f32 to vector<14x14x64xf32>
    %48 = arith.maximumf %46, %47 : vector<14x14x64xf32>
    %49 = arith.truncf %48 : vector<14x14x64xf32> to vector<14x14x64xbf16>
    %c0_48 = arith.constant 0 : index
    %c0_49 = arith.constant 0 : index
    %c0_50 = arith.constant 0 : index
    %c0_51 = arith.constant 0 : index
    %50 = vector.load %arg5[%c0_48, %c0_49, %c0_50, %c0_51] : memref<1x14x14x64xbf16, #tpu.memory_space<vmem>>, vector<1x14x14x64xbf16>
    %51 = vector.shape_cast %50 : vector<1x14x14x64xbf16> to vector<14x14x64xbf16>
    %52 = vector.shape_cast %49 : vector<14x14x64xbf16> to vector<1x14x14x64xbf16>
    tpu.vector_store %arg5[%c0_48, %c0_49, %c0_50, %c0_51], %52 {strides = array<i32>} : memref<1x14x14x64xbf16, #tpu.memory_space<vmem>>, vector<1x14x14x64xbf16>,
    return
  }
  func.func @transform_0(%arg0: i32) -> (i32, i32, i32) {
    %c0_i32 = arith.constant 0 : i32
    %c0_i32_0 = arith.constant 0 : i32
    %c0_i32_1 = arith.constant 0 : i32
    return %arg0, %c0_i32, %c0_i32_0 : i32, i32, i32
  }
  func.func @transform_1(%arg0: i32) -> (i32, i32, i32) {
    %c0_i32 = arith.constant 0 : i32
    %c0_i32_0 = arith.constant 0 : i32
    %c0_i32_1 = arith.constant 0 : i32
    %c0_i32_2 = arith.constant 0 : i32
    return %c0_i32, %c0_i32_0, %c0_i32_1 : i32, i32, i32
  }
  func.func @transform_2(%arg0: i32) -> (i32, i32) {
    %c0_i32 = arith.constant 0 : i32
    %c0_i32_0 = arith.constant 0 : i32
    %c0_i32_1 = arith.constant 0 : i32
    return %c0_i32, %c0_i32_0 : i32, i32
  }
  func.func @transform_3(%arg0: i32) -> (i32, i32, i32, i32) {
    %c0_i32 = arith.constant 0 : i32
    %c0_i32_0 = arith.constant 0 : i32
    %c0_i32_1 = arith.constant 0 : i32
    %c0_i32_2 = arith.constant 0 : i32
    return %arg0, %c0_i32, %c0_i32_0, %c0_i32_1 : i32, i32, i32, i32
  }
  func.func @transform_4(%arg0: i32) -> (i32, i32, i32, i32) {
    %c0_i32 = arith.constant 0 : i32
    %c0_i32_0 = arith.constant 0 : i32
    %c0_i32_1 = arith.constant 0 : i32
    %c0_i32_2 = arith.constant 0 : i32
    return %arg0, %c0_i32, %c0_i32_0, %c0_i32_1 : i32, i32, i32, i32
  }
}

</mosaic_0001>

<llo_original>
// kernel: _lambda_.1
$region0: #{_lambda_.1}
  #allocation0 [shape = 'u32[]', space=smem, size = 0x4, offset = 0x4, fixed_abs, tag = 'smem constant byte address 0x4 - core index']
  #allocation1 [shape = 'u32[144,128]{1,0:T(1,128)}', space=vmem, size = 0x12000, scoped, tag = 'internal scratch']
  #allocation2 [shape = 'f32[224,64]{1,0:T(8,128)}', space=vmem, size = 0x1c000, scoped, tag = 'scratch operand']
  %s0 = inlined_call_operand.vmem [shape: bf16[1,272,32], index: 0, kind: input, shape index: {}]
  %s1 = inlined_call_operand.vmem [shape: bf16[3,96,64], index: 1, kind: input, shape index: {}]
  %s2 = inlined_call_operand.vmem [shape: f32[1,64], index: 2, kind: input, shape index: {}]
  %s3 = inlined_call_operand.vmem [shape: bf16[1,14,14,64], index: 3, kind: input, shape index: {}]
  %s4 = inlined_call_operand.hbm [shape: bf16[1,14,14,64], index: 4, kind: output, shape index: {}]
  %s5 = sld [smem:[#allocation0]]
  $region26: #{_lambda_.1} parent=0
    _
  %s7 = ssub.s32 1, %s5
  %s8 = scalar_select 0, %s7, %s5
  $region1: #{_lambda_.1} parent=0
    #allocation3 [shape = 'u8[57344]{0}', space=vmem, size = 0xe000, scoped, tag = 'output window, operand 0, single buffered']
    #allocation4 [shape = 's32[1]{0}', space=sflag, size = 0x4, scoped, tag = 'scoped memory for _lambda_.1']
    %9 = vsyncpa [#allocation4], 0
    // Predicated region
    $region2: #{_lambda_.1} parent=1 // pred_check
      _
    $region3: #{_lambda_.1} parent=1 // pred_check_branch
      %11 = sbr.rel (0) target = $region5
    $region4: #{_lambda_.1} parent=1 // pred_region
      _
    $region5: #{_lambda_.1} parent=1 // pred_fallthru
      _
    // Predicated region
    $region6: #{_lambda_.1} parent=1 // pred_check
      _
    $region7: #{_lambda_.1} parent=1 // pred_check_branch
      %13 = sbr.rel (0) target = $region9
    $region8: #{_lambda_.1} parent=1 // pred_region
      _
    $region9: #{_lambda_.1} parent=1 // pred_fallthru
      _
    // Predicated region
    $region10: #{_lambda_.1} parent=1 // pred_check
      _
    $region11: #{_lambda_.1} parent=1 // pred_check_branch
      %15 = sbr.rel (0) target = $region13
    $region12: #{_lambda_.1} parent=1 // pred_region
      _
    $region13: #{_lambda_.1} parent=1 // pred_fallthru
      _
    // Predicated region
    $region14: #{_lambda_.1} parent=1 // pred_check
      _
    $region15: #{_lambda_.1} parent=1 // pred_check_branch
      %17 = sbr.rel (0) target = $region17
    $region16: #{_lambda_.1} parent=1 // pred_region
      _
    $region17: #{_lambda_.1} parent=1 // pred_fallthru
      _
    %v19 = vld [vmem:[%s0] sm:$0xf]
    %v20 = vld [vmem:[%s0 + $0x4] sm:$0xf]
    %v21 = vld [vmem:[%s0 + $0x8] sm:$0xf]
    %v22 = vld [vmem:[%s0 + $0xc] sm:$0xf]
    %v23 = vld [vmem:[%s0 + $0x10] sm:$0xf]
    %v24 = vld [vmem:[%s0 + $0x14] sm:$0xf]
    %v25 = vld [vmem:[%s0 + $0x18] sm:$0xf]
    %v26 = vld [vmem:[%s0 + $0x1c] sm:$0xf]
    %v27 = vld [vmem:[%s0 + $0x20] sm:$0xf]
    %v28 = vld [vmem:[%s0 + $0x24] sm:$0xf]
    %v29 = vld [vmem:[%s0 + $0x28] sm:$0xf]
    %v30 = vld [vmem:[%s0 + $0x2c] sm:$0xf]
    %v31 = vld [vmem:[%s0 + $0x30] sm:$0xf]
    %v32 = vld [vmem:[%s0 + $0x34] sm:$0xf]
    %v33 = vld [vmem:[%s0 + $0x38] sm:$0xf]
    %v34 = vld [vmem:[%s0 + $0x3c] sm:$0xf]
    %v35 = vld [vmem:[%s0 + $0x40] sm:$0xf]
    %v36 = vld [vmem:[%s0 + $0x44] sm:$0xf]
    %v37 = vld [vmem:[%s0 + $0x48] sm:$0xf]
    %v38 = vld [vmem:[%s0 + $0x4c] sm:$0xf]
    %v39 = vld [vmem:[%s0 + $0x50] sm:$0xf]
    %v40 = vld [vmem:[%s0 + $0x54] sm:$0xf]
    %v41 = vld [vmem:[%s0 + $0x58] sm:$0xf]
    %v42 = vld [vmem:[%s0 + $0x5c] sm:$0xf]
    %v43 = vld [vmem:[%s0 + $0x60] sm:$0xf]
    %v44 = vld [vmem:[%s0 + $0x64] sm:$0xf]
    %v45 = vld [vmem:[%s0 + $0x68] sm:$0xf]
    %v46 = vld [vmem:[%s0 + $0x6c] sm:$0xf]
    %v47 = vld [vmem:[%s0 + $0x70] sm:$0xf]
    %v48 = vld [vmem:[%s0 + $0x74] sm:$0xf]
    %v49 = vld [vmem:[%s0 + $0x78] sm:$0xf]
    %v50 = vld [vmem:[%s0 + $0x7c] sm:$0xf]
    %v79 = vunpack.c.l.b16 %v19
    %v80 = vunpack.c.l.b16 %v20
    %v81 = vunpack.c.l.b16 %v21
    %v82 = vunpack.c.l.b16 %v22
    %v83 = vunpack.c.l.b16 %v23
    %v84 = vunpack.c.l.b16 %v24
    %v85 = vunpack.c.l.b16 %v25
    %v86 = vunpack.c.l.b16 %v26
    %v87 = vunpack.c.l.b16 %v27
    %v88 = vunpack.c.l.b16 %v28
    %v89 = vunpack.c.l.b16 %v29
    %v90 = vunpack.c.l.b16 %v30
    %v91 = vunpack.c.l.b16 %v31
    %v92 = vunpack.c.l.b16 %v32
    %v93 = vunpack.c.l.b16 %v33
    %v94 = vunpack.c.l.b16 %v34
    %v95 = vunpack.c.l.b16 %v35
    %v96 = vunpack.c.l.b16 %v36
    %v97 = vunpack.c.l.b16 %v37
    %v98 = vunpack.c.l.b16 %v38
    %v99 = vunpack.c.l.b16 %v39
    %v100 = vunpack.c.l.b16 %v40
    %v101 = vunpack.c.l.b16 %v41
    %v102 = vunpack.c.l.b16 %v42
    %v103 = vunpack.c.l.b16 %v43
    %v104 = vunpack.c.l.b16 %v44
    %v105 = vunpack.c.l.b16 %v45
    %v106 = vunpack.c.l.b16 %v46
    %v107 = vpack.c.b16 %v80, %v79
    %v108 = vpack.c.b16 %v82, %v81
    %v109 = vpack.c.b16 %v84, %v83
    %v110 = vpack.c.b16 %v86, %v85
    %v111 = vpack.c.b16 %v88, %v87
    %v112 = vpack.c.b16 %v90, %v89
    %v113 = vpack.c.b16 %v92, %v91
    %v114 = vpack.c.b16 %v94, %v93
    %v115 = vpack.c.b16 %v96, %v95
    %v116 = vpack.c.b16 %v98, %v97
    %v117 = vpack.c.b16 %v100, %v99
    %v118 = vpack.c.b16 %v102, %v101
    %v119 = vpack.c.b16 %v104, %v103
    %v120 = vpack.c.b16 %v106, %v105
    %v123 = vunpack.c.l.b16 %v47
    %v124 = vunpack.c.l.b16 %v48
    %v125 = vpack.c.b16 %v124, %v123
    %126 = vrot.lane.b32.xlu0 %v108, 32
    %v127 = vpop.permute.xlu0 %126
    %128 = vrot.lane.b32.xlu0 %v109, 32
    %v129 = vpop.permute.xlu0 %128
    %130 = vrot.lane.b32.xlu0 %v110, 32
    %v131 = vpop.permute.xlu0 %130
    %132 = vrot.lane.b32.xlu0 %v111, 32
    %v133 = vpop.permute.xlu0 %132
    %134 = vrot.lane.b32.xlu0 %v112, 32
    %v135 = vpop.permute.xlu0 %134
    %136 = vrot.lane.b32.xlu0 %v113, 32
    %v137 = vpop.permute.xlu0 %136
    %138 = vrot.lane.b32.xlu0 %v114, 32
    %v139 = vpop.permute.xlu0 %138
    %140 = vrot.lane.b32.xlu0 %v115, 32
    %v141 = vpop.permute.xlu0 %140
    %142 = vrot.lane.b32.xlu0 %v116, 32
    %v143 = vpop.permute.xlu0 %142
    %144 = vrot.lane.b32.xlu0 %v117, 32
    %v145 = vpop.permute.xlu0 %144
    %146 = vrot.lane.b32.xlu0 %v118, 32
    %v147 = vpop.permute.xlu0 %146
    %148 = vrot.lane.b32.xlu0 %v119, 32
    %v149 = vpop.permute.xlu0 %148
    %150 = vrot.lane.b32.xlu0 %v120, 32
    %v151 = vpop.permute.xlu0 %150
    %152 = vrot.lane.b32.xlu0 %v125, 32
    %v153 = vpop.permute.xlu0 %152
    %v156 = vunpack.c.l.b16 %v49
    %v157 = vunpack.c.l.b16 %v50
    %v158 = vpack.c.b16 %v157, %v156
    %159 = vrot.lane.b32.xlu0 %v109, 64
    %v160 = vpop.permute.xlu0 %159
    %161 = vrot.lane.b32.xlu0 %v110, 64
    %v162 = vpop.permute.xlu0 %161
    %163 = vrot.lane.b32.xlu0 %v111, 64
    %v164 = vpop.permute.xlu0 %163
    %165 = vrot.lane.b32.xlu0 %v112, 64
    %v166 = vpop.permute.xlu0 %165
    %167 = vrot.lane.b32.xlu0 %v113, 64
    %v168 = vpop.permute.xlu0 %167
    %169 = vrot.lane.b32.xlu0 %v114, 64
    %v170 = vpop.permute.xlu0 %169
    %171 = vrot.lane.b32.xlu0 %v115, 64
    %v172 = vpop.permute.xlu0 %171
    %173 = vrot.lane.b32.xlu0 %v116, 64
    %v174 = vpop.permute.xlu0 %173
    %175 = vrot.lane.b32.xlu0 %v117, 64
    %v176 = vpop.permute.xlu0 %175
    %177 = vrot.lane.b32.xlu0 %v118, 64
    %v178 = vpop.permute.xlu0 %177
    %179 = vrot.lane.b32.xlu0 %v119, 64
    %v180 = vpop.permute.xlu0 %179
    %181 = vrot.lane.b32.xlu0 %v120, 64
    %v182 = vpop.permute.xlu0 %181
    %183 = vrot.lane.b32.xlu0 %v125, 64
    %v184 = vpop.permute.xlu0 %183
    %185 = vrot.lane.b32.xlu0 %v158, 64
    %v186 = vpop.permute.xlu0 %185
    %vm187 = vcmask 261120
    %v190 = vsel %vm187, %v107, %v127
    %v193 = vsel %vm187, %v108, %v129
    %v196 = vsel %vm187, %v109, %v131
    %v199 = vsel %vm187, %v110, %v133
    %v202 = vsel %vm187, %v111, %v135
    %v205 = vsel %vm187, %v112, %v137
    %v208 = vsel %vm187, %v113, %v139
    %v211 = vsel %vm187, %v114, %v141
    %v214 = vsel %vm187, %v115, %v143
    %v217 = vsel %vm187, %v116, %v145
    %v220 = vsel %vm187, %v117, %v147
    %v223 = vsel %vm187, %v118, %v149
    %v226 = vsel %vm187, %v119, %v151
    %v229 = vsel %vm187, %v120, %v153
    %vm230 = vcmask 523264
    %v232 = vsel %vm230, %v190, %v160
    %v234 = vsel %vm230, %v193, %v162
    %v236 = vsel %vm230, %v196, %v164
    %v238 = vsel %vm230, %v199, %v166
    %v240 = vsel %vm230, %v202, %v168
    %v242 = vsel %vm230, %v205, %v170
    %v244 = vsel %vm230, %v208, %v172
    %v246 = vsel %vm230, %v211, %v174
    %v248 = vsel %vm230, %v214, %v176
    %v250 = vsel %vm230, %v217, %v178
    %v252 = vsel %vm230, %v220, %v180
    %v254 = vsel %vm230, %v223, %v182
    %v256 = vsel %vm230, %v226, %v184
    %v258 = vsel %vm230, %v229, %v186
    %v259 = vld [vmem:[%s1] sm:$0xf]
    %v260 = vld [vmem:[%s1 + $0x4] sm:$0xf]
    %v261 = vld [vmem:[%s1 + $0x8] sm:$0xf]
    %v262 = vld [vmem:[%s1 + $0xc] sm:$0xf]
    %v263 = vld [vmem:[%s1 + $0x10] sm:$0xf]
    %v264 = vld [vmem:[%s1 + $0x14] sm:$0xf]
    %v265 = vld [vmem:[%s1 + $0x18] sm:$0xf]
    %v266 = vld [vmem:[%s1 + $0x1c] sm:$0xf]
    %v267 = vld [vmem:[%s1 + $0x20] sm:$0xf]
    %v268 = vld [vmem:[%s1 + $0x24] sm:$0xf]
    %v269 = vld [vmem:[%s1 + $0x28] sm:$0xf]
    %v270 = vld [vmem:[%s1 + $0x2c] sm:$0xf]
    %v283 = vunpack.c.l.b16 %v259
    %v284 = vunpack.c.l.b16 %v260
    %v285 = vunpack.c.l.b16 %v261
    %v286 = vunpack.c.l.b16 %v262
    %v287 = vunpack.c.l.b16 %v263
    %v288 = vunpack.c.l.b16 %v264
    %v289 = vunpack.c.l.b16 %v265
    %v290 = vunpack.c.l.b16 %v266
    %v291 = vunpack.c.l.b16 %v267
    %v292 = vunpack.c.l.b16 %v268
    %v293 = vunpack.c.l.b16 %v269
    %v294 = vunpack.c.l.b16 %v270
    %v295 = vpack.c.b16 %v284, %v283
    %v296 = vpack.c.b16 %v286, %v285
    %v297 = vpack.c.b16 %v288, %v287
    %v298 = vpack.c.b16 %v290, %v289
    %v299 = vpack.c.b16 %v292, %v291
    %v300 = vpack.c.b16 %v294, %v293
    %vm307 = vcmask 785408
    %v308 = vsel %vm307, %v232, 0
    %v310 = vsel %vm307, %v234, 0
    %v312 = vsel %vm307, %v236, 0
    %v314 = vsel %vm307, %v238, 0
    %v316 = vsel %vm307, %v240, 0
    %v318 = vsel %vm307, %v242, 0
    %v320 = vsel %vm307, %v244, 0
    %v322 = vsel %vm307, %v246, 0
    %v324 = vsel %vm307, %v248, 0
    %v326 = vsel %vm307, %v250, 0
    %v328 = vsel %vm307, %v252, 0
    %v330 = vsel %vm307, %v254, 0
    %v332 = vsel %vm307, %v256, 0
    %v334 = vsel %vm307, %v258, 0
    %336 = vmatprep.subr.bf16.mxu0 0
    %337 = vmatpush1.bf16.msra.mxu0 %v295
    %338 = vmatprep.subr.bf16.mxu0 0
    %339 = vmatpush1.bf16.msra.mxu0 %v296
    %340 = vmatprep.subr.bf16.mxu0 0
    %341 = vmatpush1.bf16.msra.mxu0 %v297
    %342 = vmatprep.subr.bf16.mxu0 0
    %343 = vmatpush1.bf16.msra.mxu0 %v298
    %344 = vmatprep.subr.bf16.mxu0 0
    %345 = vmatpush1.bf16.msra.mxu0 %v299
    %346 = vmatprep.subr.bf16.mxu0 0
    %347 = vmatpush1.bf16.msra.mxu0 %v300
    %348 = vmatprep.subr.bf16.mxu0 0
    %349 = vmatpush1.bf16.msra.mxu0 0
    %350 = vmatprep.subr.bf16.mxu0 0
    %351 = vmatpush1.bf16.msra.mxu0 0
    %352 = vmatprep.subr.bf16.mxu0 0
    %353 = vmatpush1.bf16.msra.mxu0 0
    %354 = vmatprep.subr.bf16.mxu0 0
    %355 = vmatpush1.bf16.msra.mxu0 0
    %356 = vmatprep.subr.bf16.mxu0 0
    %357 = vmatpush1.bf16.msra.mxu0 0
    %358 = vmatprep.subr.bf16.mxu0 0
    %359 = vmatpush1.bf16.msra.mxu0 0
    %360 = vmatprep.subr.bf16.mxu0 0
    %361 = vmatpush1.bf16.msra.mxu0 0
    %362 = vmatprep.subr.bf16.mxu0 0
    %363 = vmatpush1.bf16.msra.mxu0 0
    %364 = vmatprep.subr.bf16.mxu0 0
    %365 = vmatpush1.bf16.msra.mxu0 0
    %366 = vmatprep.subr.bf16.mxu0 0
    %367 = vmatpush1.bf16.msra.mxu0 0
    %368 = vmatprep.mubr.bf16.mxu0 0
    %369 = vmatmul.mubr.bf16.gmra.mrb[0].mxu0 %v308
    %v370 = vpop.f32.mrb[0].mxu0
    %v371 = vadd.f32 0.0, %v370
    %v372 = vpop.f32.mrb[0].mxu0
    %v373 = vpop.f32.mrb[0].mxu0
    %v374 = vadd.f32 0.0, %v373
    %v375 = vpop.f32.mrb[0].mxu0
    %376 = vmatprep.mubr.bf16.mxu0 0
    %377 = vmatmul.mubr.bf16.gmra.mrb[0].mxu0 %v310
    %v378 = vpop.f32.mrb[0].mxu0
    %v379 = vadd.f32 0.0, %v378
    %v380 = vpop.f32.mrb[0].mxu0
    %v381 = vpop.f32.mrb[0].mxu0
    %v382 = vadd.f32 0.0, %v381
    %v383 = vpop.f32.mrb[0].mxu0
    %384 = vmatprep.mubr.bf16.mxu0 0
    %385 = vmatmul.mubr.bf16.gmra.mrb[0].mxu0 %v312
    %v386 = vpop.f32.mrb[0].mxu0
    %v387 = vadd.f32 0.0, %v386
    %v388 = vpop.f32.mrb[0].mxu0
    %v389 = vpop.f32.mrb[0].mxu0
    %v390 = vadd.f32 0.0, %v389
    %v391 = vpop.f32.mrb[0].mxu0
    %392 = vmatprep.mubr.bf16.mxu0 0
    %393 = vmatmul.mubr.bf16.gmra.mrb[0].mxu0 %v314
    %v394 = vpop.f32.mrb[0].mxu0
    %v395 = vadd.f32 0.0, %v394
    %v396 = vpop.f32.mrb[0].mxu0
    %v397 = vpop.f32.mrb[0].mxu0
    %v398 = vadd.f32 0.0, %v397
    %v399 = vpop.f32.mrb[0].mxu0
    %400 = vmatprep.mubr.bf16.mxu0 0
    %401 = vmatmul.mubr.bf16.gmra.mrb[0].mxu0 %v316
    %v402 = vpop.f32.mrb[0].mxu0
    %v403 = vadd.f32 0.0, %v402
    %v404 = vpop.f32.mrb[0].mxu0
    %v405 = vpop.f32.mrb[0].mxu0
    %v406 = vadd.f32 0.0, %v405
    %v407 = vpop.f32.mrb[0].mxu0
    %408 = vmatprep.mubr.bf16.mxu0 0
    %409 = vmatmul.mubr.bf16.gmra.mrb[0].mxu0 %v318
    %v410 = vpop.f32.mrb[0].mxu0
    %v411 = vadd.f32 0.0, %v410
    %v412 = vpop.f32.mrb[0].mxu0
    %v413 = vpop.f32.mrb[0].mxu0
    %v414 = vadd.f32 0.0, %v413
    %v415 = vpop.f32.mrb[0].mxu0
    %416 = vmatprep.mubr.bf16.mxu0 0
    %417 = vmatmul.mubr.bf16.gmra.mrb[0].mxu0 %v320
    %v418 = vpop.f32.mrb[0].mxu0
    %v419 = vadd.f32 0.0, %v418
    %v420 = vpop.f32.mrb[0].mxu0
    %v421 = vpop.f32.mrb[0].mxu0
    %v422 = vadd.f32 0.0, %v421
    %v423 = vpop.f32.mrb[0].mxu0
    %424 = vmatprep.mubr.bf16.mxu0 0
    %425 = vmatmul.mubr.bf16.gmra.mrb[0].mxu0 %v322
    %v426 = vpop.f32.mrb[0].mxu0
    %v427 = vadd.f32 0.0, %v426
    %v428 = vpop.f32.mrb[0].mxu0
    %v429 = vpop.f32.mrb[0].mxu0
    %v430 = vadd.f32 0.0, %v429
    %v431 = vpop.f32.mrb[0].mxu0
    %432 = vmatprep.mubr.bf16.mxu0 0
    %433 = vmatmul.mubr.bf16.gmra.mrb[0].mxu0 %v324
    %v434 = vpop.f32.mrb[0].mxu0
    %v435 = vadd.f32 0.0, %v434
    %v436 = vpop.f32.mrb[0].mxu0
    %v437 = vpop.f32.mrb[0].mxu0
    %v438 = vadd.f32 0.0, %v437
    %v439 = vpop.f32.mrb[0].mxu0
    %440 = vmatprep.mubr.bf16.mxu0 0
    %441 = vmatmul.mubr.bf16.gmra.mrb[0].mxu0 %v326
    %v442 = vpop.f32.mrb[0].mxu0
    %v443 = vadd.f32 0.0, %v442
    %v444 = vpop.f32.mrb[0].mxu0
    %v445 = vpop.f32.mrb[0].mxu0
    %v446 = vadd.f32 0.0, %v445
    %v447 = vpop.f32.mrb[0].mxu0
    %448 = vmatprep.mubr.bf16.mxu0 0
    %449 = vmatmul.mubr.bf16.gmra.mrb[0].mxu0 %v328
    %v450 = vpop.f32.mrb[0].mxu0
    %v451 = vadd.f32 0.0, %v450
    %v452 = vpop.f32.mrb[0].mxu0
    %v453 = vpop.f32.mrb[0].mxu0
    %v454 = vadd.f32 0.0, %v453
    %v455 = vpop.f32.mrb[0].mxu0
    %456 = vmatprep.mubr.bf16.mxu0 0
    %457 = vmatmul.mubr.bf16.gmra.mrb[0].mxu0 %v330
    %v458 = vpop.f32.mrb[0].mxu0
    %v459 = vadd.f32 0.0, %v458
    %v460 = vpop.f32.mrb[0].mxu0
    %v461 = vpop.f32.mrb[0].mxu0
    %v462 = vadd.f32 0.0, %v461
    %v463 = vpop.f32.mrb[0].mxu0
    %464 = vmatprep.mubr.bf16.mxu0 0
    %465 = vmatmul.mubr.bf16.gmra.mrb[0].mxu0 %v332
    %v466 = vpop.f32.mrb[0].mxu0
    %v467 = vadd.f32 0.0, %v466
    %v468 = vpop.f32.mrb[0].mxu0
    %v469 = vpop.f32.mrb[0].mxu0
    %v470 = vadd.f32 0.0, %v469
    %v471 = vpop.f32.mrb[0].mxu0
    %472 = vmatprep.mubr.bf16.mxu0 0
    %473 = vmatmul.mubr.bf16.gmra.mrb[0].mxu0 %v334
    %v474 = vpop.f32.mrb[0].mxu0
    %v475 = vadd.f32 0.0, %v474
    %v476 = vpop.f32.mrb[0].mxu0
    %v477 = vpop.f32.mrb[0].mxu0
    %v478 = vadd.f32 0.0, %v477
    %v479 = vpop.f32.mrb[0].mxu0
    %480 = vdwg.mxu0
    %481 = vst.msk [vmem:[#allocation2] sm:$0xff] %vm230, %v371
    %482 = vst.msk [vmem:[#allocation2 + $0x8] sm:$0xff] %vm230, %v374
    %483 = vst.msk [vmem:[#allocation2 + $0x10] sm:$0xff] %vm230, %v379
    %484 = vst.msk [vmem:[#allocation2 + $0x18] sm:$0xff] %vm230, %v382
    %485 = vst.msk [vmem:[#allocation2 + $0x20] sm:$0xff] %vm230, %v387
    %486 = vst.msk [vmem:[#allocation2 + $0x28] sm:$0xff] %vm230, %v390
    %487 = vst.msk [vmem:[#allocation2 + $0x30] sm:$0xff] %vm230, %v395
    %488 = vst.msk [vmem:[#allocation2 + $0x38] sm:$0xff] %vm230, %v398
    %489 = vst.msk [vmem:[#allocation2 + $0x40] sm:$0xff] %vm230, %v403
    %490 = vst.msk [vmem:[#allocation2 + $0x48] sm:$0xff] %vm230, %v406
    %491 = vst.msk [vmem:[#allocation2 + $0x50] sm:$0xff] %vm230, %v411
    %492 = vst.msk [vmem:[#allocation2 + $0x58] sm:$0xff] %vm230, %v414
    %493 = vst.msk [vmem:[#allocation2 + $0x60] sm:$0xff] %vm230, %v419
    %494 = vst.msk [vmem:[#allocation2 + $0x68] sm:$0xff] %vm230, %v422
    %495 = vst.msk [vmem:[#allocation2 + $0x70] sm:$0xff] %vm230, %v427
    %496 = vst.msk [vmem:[#allocation2 + $0x78] sm:$0xff] %vm230, %v430
    %497 = vst.msk [vmem:[#allocation2 + $0x80] sm:$0xff] %vm230, %v435
    %498 = vst.msk [vmem:[#allocation2 + $0x88] sm:$0xff] %vm230, %v438
    %499 = vst.msk [vmem:[#allocation2 + $0x90] sm:$0xff] %vm230, %v443
    %500 = vst.msk [vmem:[#allocation2 + $0x98] sm:$0xff] %vm230, %v446
    %501 = vst.msk [vmem:[#allocation2 + $0xa0] sm:$0xff] %vm230, %v451
    %502 = vst.msk [vmem:[#allocation2 + $0xa8] sm:$0xff] %vm230, %v454
    %503 = vst.msk [vmem:[#allocation2 + $0xb0] sm:$0xff] %vm230, %v459
    %504 = vst.msk [vmem:[#allocation2 + $0xb8] sm:$0xff] %vm230, %v462
    %505 = vst.msk [vmem:[#allocation2 + $0xc0] sm:$0xff] %vm230, %v467
    %506 = vst.msk [vmem:[#allocation2 + $0xc8] sm:$0xff] %vm230, %v470
    %507 = vst.msk [vmem:[#allocation2 + $0xd0] sm:$0xff] %vm230, %v475
    %508 = vst.msk [vmem:[#allocation2 + $0xd8] sm:$0xff] %vm230, %v478
    %v509 = vld [vmem:[%s0] sm:$0xf]
    %v510 = vld [vmem:[%s0 + $0x4] sm:$0xf]
    %v511 = vld [vmem:[%s0 + $0x8] sm:$0xf]
    %v512 = vld [vmem:[%s0 + $0xc] sm:$0xf]
    %v513 = vld [vmem:[%s0 + $0x10] sm:$0xf]
    %v514 = vld [vmem:[%s0 + $0x14] sm:$0xf]
    %v515 = vld [vmem:[%s0 + $0x18] sm:$0xf]
    %v516 = vld [vmem:[%s0 + $0x1c] sm:$0xf]
    %v517 = vld [vmem:[%s0 + $0x20] sm:$0xf]
    %v518 = vld [vmem:[%s0 + $0x24] sm:$0xf]
    %v519 = vld [vmem:[%s0 + $0x28] sm:$0xf]
    %v520 = vld [vmem:[%s0 + $0x2c] sm:$0xf]
    %v521 = vld [vmem:[%s0 + $0x30] sm:$0xf]
    %v522 = vld [vmem:[%s0 + $0x34] sm:$0xf]
    %v523 = vld [vmem:[%s0 + $0x38] sm:$0xf]
    %v524 = vld [vmem:[%s0 + $0x3c] sm:$0xf]
    %v525 = vld [vmem:[%s0 + $0x40] sm:$0xf]
    %v526 = vld [vmem:[%s0 + $0x44] sm:$0xf]
    %v527 = vld [vmem:[%s0 + $0x48] sm:$0xf]
    %v528 = vld [vmem:[%s0 + $0x4c] sm:$0xf]
    %v529 = vld [vmem:[%s0 + $0x50] sm:$0xf]
    %v530 = vld [vmem:[%s0 + $0x54] sm:$0xf]
    %v531 = vld [vmem:[%s0 + $0x58] sm:$0xf]
    %v532 = vld [vmem:[%s0 + $0x5c] sm:$0xf]
    %v533 = vld [vmem:[%s0 + $0x60] sm:$0xf]
    %v534 = vld [vmem:[%s0 + $0x64] sm:$0xf]
    %v535 = vld [vmem:[%s0 + $0x68] sm:$0xf]
    %v536 = vld [vmem:[%s0 + $0x6c] sm:$0xf]
    %v537 = vld [vmem:[%s0 + $0x70] sm:$0x1]
    %v538 = vld [vmem:[%s0 + $0x70] sm:$0xf]
    %v539 = vld [vmem:[%s0 + $0x74] sm:$0xf]
    %v540 = vld [vmem:[%s0 + $0x78] sm:$0x1]
    %v541 = vld [vmem:[%s0 + $0x78] sm:$0xf]
    %v542 = vld [vmem:[%s0 + $0x7c] sm:$0xf]
    %v543 = vld [vmem:[%s0 + $0x80] sm:$0x1]
    %v573 = vunpack.c.l.b16 %v509
    %v574 = vunpack.c.l.b16 %v510
    %v575 = vunpack.c.l.b16 %v511
    %v576 = vunpack.c.l.b16 %v512
    %v577 = vunpack.c.l.b16 %v513
    %v578 = vunpack.c.l.b16 %v514
    %v579 = vunpack.c.l.b16 %v515
    %v580 = vunpack.c.l.b16 %v516
    %v581 = vunpack.c.l.b16 %v517
    %v582 = vunpack.c.l.b16 %v518
    %v583 = vunpack.c.l.b16 %v519
    %v584 = vunpack.c.l.b16 %v520
    %v585 = vunpack.c.l.b16 %v521
    %v586 = vunpack.c.l.b16 %v522
    %v587 = vunpack.c.l.b16 %v523
    %v588 = vunpack.c.l.b16 %v524
    %v589 = vunpack.c.l.b16 %v525
    %v590 = vunpack.c.l.b16 %v526
    %v591 = vunpack.c.l.b16 %v527
    %v592 = vunpack.c.l.b16 %v528
    %v593 = vunpack.c.l.b16 %v529
    %v594 = vunpack.c.l.b16 %v530
    %v595 = vunpack.c.l.b16 %v531
    %v596 = vunpack.c.l.b16 %v532
    %v597 = vunpack.c.l.b16 %v533
    %v598 = vunpack.c.l.b16 %v534
    %v599 = vunpack.c.l.b16 %v535
    %v600 = vunpack.c.l.b16 %v536
    %v601 = vunpack.c.l.b16 %v537
    %v602 = vpack.c.b16 %v574, %v573
    %v603 = vpack.c.b16 %v576, %v575
    %v604 = vpack.c.b16 %v578, %v577
    %v605 = vpack.c.b16 %v580, %v579
    %v606 = vpack.c.b16 %v582, %v581
    %v607 = vpack.c.b16 %v584, %v583
    %v608 = vpack.c.b16 %v586, %v585
    %v609 = vpack.c.b16 %v588, %v587
    %v610 = vpack.c.b16 %v590, %v589
    %v611 = vpack.c.b16 %v592, %v591
    %v612 = vpack.c.b16 %v594, %v593
    %v613 = vpack.c.b16 %v596, %v595
    %v614 = vpack.c.b16 %v598, %v597
    %v615 = vpack.c.b16 %v600, %v599
    %v616 = vpack.c.b16 %v601, %v601
    %v620 = vunpack.c.l.b16 %v538
    %v621 = vunpack.c.l.b16 %v539
    %v622 = vunpack.c.l.b16 %v540
    %v623 = vpack.c.b16 %v621, %v620
    %v624 = vpack.c.b16 %v622, %v622
    %625 = vrot.lane.b32.xlu0 %v603, 32
    %v626 = vpop.permute.xlu0 %625
    %627 = vrot.lane.b32.xlu0 %v604, 32
    %v628 = vpop.permute.xlu0 %627
    %629 = vrot.lane.b32.xlu0 %v605, 32
    %v630 = vpop.permute.xlu0 %629
    %631 = vrot.lane.b32.xlu0 %v606, 32
    %v632 = vpop.permute.xlu0 %631
    %633 = vrot.lane.b32.xlu0 %v607, 32
    %v634 = vpop.permute.xlu0 %633
    %635 = vrot.lane.b32.xlu0 %v608, 32
    %v636 = vpop.permute.xlu0 %635
    %637 = vrot.lane.b32.xlu0 %v609, 32
    %v638 = vpop.permute.xlu0 %637
    %639 = vrot.lane.b32.xlu0 %v610, 32
    %v640 = vpop.permute.xlu0 %639
    %641 = vrot.lane.b32.xlu0 %v611, 32
    %v642 = vpop.permute.xlu0 %641
    %643 = vrot.lane.b32.xlu0 %v612, 32
    %v644 = vpop.permute.xlu0 %643
    %645 = vrot.lane.b32.xlu0 %v613, 32
    %v646 = vpop.permute.xlu0 %645
    %647 = vrot.lane.b32.xlu0 %v614, 32
    %v648 = vpop.permute.xlu0 %647
    %649 = vrot.lane.b32.xlu0 %v615, 32
    %v650 = vpop.permute.xlu0 %649
    %651 = vrot.lane.b32.xlu0 %v623, 32
    %v652 = vpop.permute.xlu0 %651
    %653 = vrot.lane.b32.xlu0 %v624, 32
    %v654 = vpop.permute.xlu0 %653
    %v658 = vunpack.c.l.b16 %v541
    %v659 = vunpack.c.l.b16 %v542
    %v660 = vunpack.c.l.b16 %v543
    %v661 = vpack.c.b16 %v659, %v658
    %v662 = vpack.c.b16 %v660, %v660
    %663 = vrot.lane.b32.xlu0 %v604, 64
    %v664 = vpop.permute.xlu0 %663
    %665 = vrot.lane.b32.xlu0 %v605, 64
    %v666 = vpop.permute.xlu0 %665
    %667 = vrot.lane.b32.xlu0 %v606, 64
    %v668 = vpop.permute.xlu0 %667
    %669 = vrot.lane.b32.xlu0 %v607, 64
    %v670 = vpop.permute.xlu0 %669
    %671 = vrot.lane.b32.xlu0 %v608, 64
    %v672 = vpop.permute.xlu0 %671
    %673 = vrot.lane.b32.xlu0 %v609, 64
    %v674 = vpop.permute.xlu0 %673
    %675 = vrot.lane.b32.xlu0 %v610, 64
    %v676 = vpop.permute.xlu0 %675
    %677 = vrot.lane.b32.xlu0 %v611, 64
    %v678 = vpop.permute.xlu0 %677
    %679 = vrot.lane.b32.xlu0 %v612, 64
    %v680 = vpop.permute.xlu0 %679
    %681 = vrot.lane.b32.xlu0 %v613, 64
    %v682 = vpop.permute.xlu0 %681
    %683 = vrot.lane.b32.xlu0 %v614, 64
    %v684 = vpop.permute.xlu0 %683
    %685 = vrot.lane.b32.xlu0 %v615, 64
    %v686 = vpop.permute.xlu0 %685
    %687 = vrot.lane.b32.xlu0 %v623, 64
    %v688 = vpop.permute.xlu0 %687
    %689 = vrot.lane.b32.xlu0 %v661, 64
    %v690 = vpop.permute.xlu0 %689
    %691 = vrot.lane.b32.xlu0 %v662, 64
    %v692 = vpop.permute.xlu0 %691
    %v695 = vsel %vm187, %v602, %v626
    %v698 = vsel %vm187, %v603, %v628
    %v701 = vsel %vm187, %v604, %v630
    %v704 = vsel %vm187, %v605, %v632
    %v707 = vsel %vm187, %v606, %v634
    %v710 = vsel %vm187, %v607, %v636
    %v713 = vsel %vm187, %v608, %v638
    %v716 = vsel %vm187, %v609, %v640
    %v719 = vsel %vm187, %v610, %v642
    %v722 = vsel %vm187, %v611, %v644
    %v725 = vsel %vm187, %v612, %v646
    %v728 = vsel %vm187, %v613, %v648
    %v731 = vsel %vm187, %v614, %v650
    %v734 = vsel %vm187, %v615, %v652
    %v737 = vsel %vm187, %v616, %v654
    %v739 = vsel %vm230, %v695, %v664
    %v741 = vsel %vm230, %v698, %v666
    %v743 = vsel %vm230, %v701, %v668
    %v745 = vsel %vm230, %v704, %v670
    %v747 = vsel %vm230, %v707, %v672
    %v749 = vsel %vm230, %v710, %v674
    %v751 = vsel %vm230, %v713, %v676
    %v753 = vsel %vm230, %v716, %v678
    %v755 = vsel %vm230, %v719, %v680
    %v757 = vsel %vm230, %v722, %v682
    %v759 = vsel %vm230, %v725, %v684
    %v761 = vsel %vm230, %v728, %v686
    %v763 = vsel %vm230, %v731, %v688
    %v765 = vsel %vm230, %v734, %v690
    %v767 = vsel %vm230, %v737, %v692
    %s768 = scalar_lea.vmem %s1, 48
    %v769 = vld [vmem:[%s768] sm:$0xf]
    %v770 = vld [vmem:[%s768 + $0x4] sm:$0xf]
    %v771 = vld [vmem:[%s768 + $0x8] sm:$0xf]
    %v772 = vld [vmem:[%s768 + $0xc] sm:$0xf]
    %v773 = vld [vmem:[%s768 + $0x10] sm:$0xf]
    %v774 = vld [vmem:[%s768 + $0x14] sm:$0xf]
    %v775 = vld [vmem:[%s768 + $0x18] sm:$0xf]
    %v776 = vld [vmem:[%s768 + $0x1c] sm:$0xf]
    %v777 = vld [vmem:[%s768 + $0x20] sm:$0xf]
    %v778 = vld [vmem:[%s768 + $0x24] sm:$0xf]
    %v779 = vld [vmem:[%s768 + $0x28] sm:$0xf]
    %v780 = vld [vmem:[%s768 + $0x2c] sm:$0xf]
    %vm781 = vsmask.f32 7424
    %v782 = vshrl.u32 %v739, 16
    %v784 = vshll.u32 %v739, 16
    %v786 = vrot.slane %v784, 1
    %v787 = vor.u32 %v782, %v786
    %v788 = vshll.u32 %v741, 16
    %v790 = vrot.slane %v788, 1
    %v791 = vsel %vm781, %v787, %v790
    %v792 = vshrl.u32 %v741, 16
    %v794 = vor.u32 %v792, %v790
    %v795 = vshll.u32 %v743, 16
    %v797 = vrot.slane %v795, 1
    %v798 = vsel %vm781, %v794, %v797
    %v799 = vshrl.u32 %v743, 16
    %v801 = vor.u32 %v799, %v797
    %v802 = vshll.u32 %v745, 16
    %v804 = vrot.slane %v802, 1
    %v805 = vsel %vm781, %v801, %v804
    %v806 = vshrl.u32 %v745, 16
    %v808 = vor.u32 %v806, %v804
    %v809 = vshll.u32 %v747, 16
    %v811 = vrot.slane %v809, 1
    %v812 = vsel %vm781, %v808, %v811
    %v813 = vshrl.u32 %v747, 16
    %v815 = vor.u32 %v813, %v811
    %v816 = vshll.u32 %v749, 16
    %v818 = vrot.slane %v816, 1
    %v819 = vsel %vm781, %v815, %v818
    %v820 = vshrl.u32 %v749, 16
    %v822 = vor.u32 %v820, %v818
    %v823 = vshll.u32 %v751, 16
    %v825 = vrot.slane %v823, 1
    %v826 = vsel %vm781, %v822, %v825
    %v827 = vshrl.u32 %v751, 16
    %v829 = vor.u32 %v827, %v825
    %v830 = vshll.u32 %v753, 16
    %v832 = vrot.slane %v830, 1
    %v833 = vsel %vm781, %v829, %v832
    %v834 = vshrl.u32 %v753, 16
    %v836 = vor.u32 %v834, %v832
    %v837 = vshll.u32 %v755, 16
    %v839 = vrot.slane %v837, 1
    %v840 = vsel %vm781, %v836, %v839
    %v841 = vshrl.u32 %v755, 16
    %v843 = vor.u32 %v841, %v839
    %v844 = vshll.u32 %v757, 16
    %v846 = vrot.slane %v844, 1
    %v847 = vsel %vm781, %v843, %v846
    %v848 = vshrl.u32 %v757, 16
    %v850 = vor.u32 %v848, %v846
    %v851 = vshll.u32 %v759, 16
    %v853 = vrot.slane %v851, 1
    %v854 = vsel %vm781, %v850, %v853
    %v855 = vshrl.u32 %v759, 16
    %v857 = vor.u32 %v855, %v853
    %v858 = vshll.u32 %v761, 16
    %v860 = vrot.slane %v858, 1
    %v861 = vsel %vm781, %v857, %v860
    %v862 = vshrl.u32 %v761, 16
    %v864 = vor.u32 %v862, %v860
    %v865 = vshll.u32 %v763, 16
    %v867 = vrot.slane %v865, 1
    %v868 = vsel %vm781, %v864, %v867
    %v869 = vshrl.u32 %v763, 16
    %v871 = vor.u32 %v869, %v867
    %v872 = vshll.u32 %v765, 16
    %v874 = vrot.slane %v872, 1
    %v875 = vsel %vm781, %v871, %v874
    %v876 = vshrl.u32 %v765, 16
    %v878 = vor.u32 %v876, %v874
    %v879 = vshll.u32 %v767, 16
    %v881 = vrot.slane %v879, 1
    %v882 = vsel %vm781, %v878, %v881
    %v895 = vunpack.c.l.b16 %v769
    %v896 = vunpack.c.l.b16 %v770
    %v897 = vunpack.c.l.b16 %v771
    %v898 = vunpack.c.l.b16 %v772
    %v899 = vunpack.c.l.b16 %v773
    %v900 = vunpack.c.l.b16 %v774
    %v901 = vunpack.c.l.b16 %v775
    %v902 = vunpack.c.l.b16 %v776
    %v903 = vunpack.c.l.b16 %v777
    %v904 = vunpack.c.l.b16 %v778
    %v905 = vunpack.c.l.b16 %v779
    %v906 = vunpack.c.l.b16 %v780
    %v907 = vpack.c.b16 %v896, %v895
    %v908 = vpack.c.b16 %v898, %v897
    %v909 = vpack.c.b16 %v900, %v899
    %v910 = vpack.c.b16 %v902, %v901
    %v911 = vpack.c.b16 %v904, %v903
    %v912 = vpack.c.b16 %v906, %v905
    %v920 = vsel %vm307, %v791, 0
    %v923 = vsel %vm307, %v798, 0
    %v926 = vsel %vm307, %v805, 0
    %v929 = vsel %vm307, %v812, 0
    %v932 = vsel %vm307, %v819, 0
    %v935 = vsel %vm307, %v826, 0
    %v938 = vsel %vm307, %v833, 0
    %v941 = vsel %vm307, %v840, 0
    %v944 = vsel %vm307, %v847, 0
    %v947 = vsel %vm307, %v854, 0
    %v950 = vsel %vm307, %v861, 0
    %v953 = vsel %vm307, %v868, 0
    %v956 = vsel %vm307, %v875, 0
    %v959 = vsel %vm307, %v882, 0
    %961 = vmatprep.subr.bf16.mxu0 0
    %962 = vmatpush1.bf16.msra.mxu0 %v907
    %963 = vmatprep.subr.bf16.mxu0 0
    %964 = vmatpush1.bf16.msra.mxu0 %v908
    %965 = vmatprep.subr.bf16.mxu0 0
    %966 = vmatpush1.bf16.msra.mxu0 %v909
    %967 = vmatprep.subr.bf16.mxu0 0
    %968 = vmatpush1.bf16.msra.mxu0 %v910
    %969 = vmatprep.subr.bf16.mxu0 0
    %970 = vmatpush1.bf16.msra.mxu0 %v911
    %971 = vmatprep.subr.bf16.mxu0 0
    %972 = vmatpush1.bf16.msra.mxu0 %v912
    %973 = vmatprep.subr.bf16.mxu0 0
    %974 = vmatpush1.bf16.msra.mxu0 0
    %975 = vmatprep.subr.bf16.mxu0 0
    %976 = vmatpush1.bf16.msra.mxu0 0
    %977 = vmatprep.subr.bf16.mxu0 0
    %978 = vmatpush1.bf16.msra.mxu0 0
    %979 = vmatprep.subr.bf16.mxu0 0
    %980 = vmatpush1.bf16.msra.mxu0 0
    %981 = vmatprep.subr.bf16.mxu0 0
    %982 = vmatpush1.bf16.msra.mxu0 0
    %983 = vmatprep.subr.bf16.mxu0 0
    %984 = vmatpush1.bf16.msra.mxu0 0
    %985 = vmatprep.subr.bf16.mxu0 0
    %986 = vmatpush1.bf16.msra.mxu0 0
    %987 = vmatprep.subr.bf16.mxu0 0
    %988 = vmatpush1.bf16.msra.mxu0 0
    %989 = vmatprep.subr.bf16.mxu0 0
    %990 = vmatpush1.bf16.msra.mxu0 0
    %991 = vmatprep.subr.bf16.mxu0 0
    %992 = vmatpush1.bf16.msra.mxu0 0
    %993 = vmatprep.mubr.bf16.mxu0 0
    %994 = vmatmul.mubr.bf16.gmra.mrb[0].mxu0 %v920
    %v995 = vpop.f32.mrb[0].mxu0
    %v996 = vadd.f32 0.0, %v995
    %v997 = vpop.f32.mrb[0].mxu0
    %v998 = vpop.f32.mrb[0].mxu0
    %v999 = vadd.f32 0.0, %v998
    %v1000 = vpop.f32.mrb[0].mxu0
    %1001 = vmatprep.mubr.bf16.mxu0 0
    %1002 = vmatmul.mubr.bf16.gmra.mrb[0].mxu0 %v923
    %v1003 = vpop.f32.mrb[0].mxu0
    %v1004 = vadd.f32 0.0, %v1003
    %v1005 = vpop.f32.mrb[0].mxu0
    %v1006 = vpop.f32.mrb[0].mxu0
    %v1007 = vadd.f32 0.0, %v1006
    %v1008 = vpop.f32.mrb[0].mxu0
    %1009 = vmatprep.mubr.bf16.mxu0 0
    %1010 = vmatmul.mubr.bf16.gmra.mrb[0].mxu0 %v926
    %v1011 = vpop.f32.mrb[0].mxu0
    %v1012 = vadd.f32 0.0, %v1011
    %v1013 = vpop.f32.mrb[0].mxu0
    %v1014 = vpop.f32.mrb[0].mxu0
    %v1015 = vadd.f32 0.0, %v1014
    %v1016 = vpop.f32.mrb[0].mxu0
    %1017 = vmatprep.mubr.bf16.mxu0 0
    %1018 = vmatmul.mubr.bf16.gmra.mrb[0].mxu0 %v929
    %v1019 = vpop.f32.mrb[0].mxu0
    %v1020 = vadd.f32 0.0, %v1019
    %v1021 = vpop.f32.mrb[0].mxu0
    %v1022 = vpop.f32.mrb[0].mxu0
    %v1023 = vadd.f32 0.0, %v1022
    %v1024 = vpop.f32.mrb[0].mxu0
    %1025 = vmatprep.mubr.bf16.mxu0 0
    %1026 = vmatmul.mubr.bf16.gmra.mrb[0].mxu0 %v932
    %v1027 = vpop.f32.mrb[0].mxu0
    %v1028 = vadd.f32 0.0, %v1027
    %v1029 = vpop.f32.mrb[0].mxu0
    %v1030 = vpop.f32.mrb[0].mxu0
    %v1031 = vadd.f32 0.0, %v1030
    %v1032 = vpop.f32.mrb[0].mxu0
    %1033 = vmatprep.mubr.bf16.mxu0 0
    %1034 = vmatmul.mubr.bf16.gmra.mrb[0].mxu0 %v935
    %v1035 = vpop.f32.mrb[0].mxu0
    %v1036 = vadd.f32 0.0, %v1035
    %v1037 = vpop.f32.mrb[0].mxu0
    %v1038 = vpop.f32.mrb[0].mxu0
    %v1039 = vadd.f32 0.0, %v1038
    %v1040 = vpop.f32.mrb[0].mxu0
    %1041 = vmatprep.mubr.bf16.mxu0 0
    %1042 = vmatmul.mubr.bf16.gmra.mrb[0].mxu0 %v938
    %v1043 = vpop.f32.mrb[0].mxu0
    %v1044 = vadd.f32 0.0, %v1043
    %v1045 = vpop.f32.mrb[0].mxu0
    %v1046 = vpop.f32.mrb[0].mxu0
    %v1047 = vadd.f32 0.0, %v1046
    %v1048 = vpop.f32.mrb[0].mxu0
    %1049 = vmatprep.mubr.bf16.mxu0 0
    %1050 = vmatmul.mubr.bf16.gmra.mrb[0].mxu0 %v941
    %v1051 = vpop.f32.mrb[0].mxu0
    %v1052 = vadd.f32 0.0, %v1051
    %v1053 = vpop.f32.mrb[0].mxu0
    %v1054 = vpop.f32.mrb[0].mxu0
    %v1055 = vadd.f32 0.0, %v1054
    %v1056 = vpop.f32.mrb[0].mxu0
    %1057 = vmatprep.mubr.bf16.mxu0 0
    %1058 = vmatmul.mubr.bf16.gmra.mrb[0].mxu0 %v944
    %v1059 = vpop.f32.mrb[0].mxu0
    %v1060 = vadd.f32 0.0, %v1059
    %v1061 = vpop.f32.mrb[0].mxu0
    %v1062 = vpop.f32.mrb[0].mxu0
    %v1063 = vadd.f32 0.0, %v1062
    %v1064 = vpop.f32.mrb[0].mxu0
    %1065 = vmatprep.mubr.bf16.mxu0 0
    %1066 = vmatmul.mubr.bf16.gmra.mrb[0].mxu0 %v947
    %v1067 = vpop.f32.mrb[0].mxu0
    %v1068 = vadd.f32 0.0, %v1067
    %v1069 = vpop.f32.mrb[0].mxu0
    %v1070 = vpop.f32.mrb[0].mxu0
    %v1071 = vadd.f32 0.0, %v1070
    %v1072 = vpop.f32.mrb[0].mxu0
    %1073 = vmatprep.mubr.bf16.mxu0 0
    %1074 = vmatmul.mubr.bf16.gmra.mrb[0].mxu0 %v950
    %v1075 = vpop.f32.mrb[0].mxu0
    %v1076 = vadd.f32 0.0, %v1075
    %v1077 = vpop.f32.mrb[0].mxu0
    %v1078 = vpop.f32.mrb[0].mxu0
    %v1079 = vadd.f32 0.0, %v1078
    %v1080 = vpop.f32.mrb[0].mxu0
    %1081 = vmatprep.mubr.bf16.mxu0 0
    %1082 = vmatmul.mubr.bf16.gmra.mrb[0].mxu0 %v953
    %v1083 = vpop.f32.mrb[0].mxu0
    %v1084 = vadd.f32 0.0, %v1083
    %v1085 = vpop.f32.mrb[0].mxu0
    %v1086 = vpop.f32.mrb[0].mxu0
    %v1087 = vadd.f32 0.0, %v1086
    %v1088 = vpop.f32.mrb[0].mxu0
    %1089 = vmatprep.mubr.bf16.mxu0 0
    %1090 = vmatmul.mubr.bf16.gmra.mrb[0].mxu0 %v956
    %v1091 = vpop.f32.mrb[0].mxu0
    %v1092 = vadd.f32 0.0, %v1091
    %v1093 = vpop.f32.mrb[0].mxu0
    %v1094 = vpop.f32.mrb[0].mxu0
    %v1095 = vadd.f32 0.0, %v1094
    %v1096 = vpop.f32.mrb[0].mxu0
    %1097 = vmatprep.mubr.bf16.mxu0 0
    %1098 = vmatmul.mubr.bf16.gmra.mrb[0].mxu0 %v959
    %v1099 = vpop.f32.mrb[0].mxu0
    %v1100 = vadd.f32 0.0, %v1099
    %v1101 = vpop.f32.mrb[0].mxu0
    %v1102 = vpop.f32.mrb[0].mxu0
    %v1103 = vadd.f32 0.0, %v1102
    %v1104 = vpop.f32.mrb[0].mxu0
    %1105 = vdwg.mxu0
    %v1106 = vld [vmem:[#allocation2] sm:$0xff]
    %v1107 = vld [vmem:[#allocation2 + $0x8] sm:$0xff]
    %v1108 = vld [vmem:[#allocation2 + $0x10] sm:$0xff]
    %v1109 = vld [vmem:[#allocation2 + $0x18] sm:$0xff]
    %v1110 = vld [vmem:[#allocation2 + $0x20] sm:$0xff]
    %v1111 = vld [vmem:[#allocation2 + $0x28] sm:$0xff]
    %v1112 = vld [vmem:[#allocation2 + $0x30] sm:$0xff]
    %v1113 = vld [vmem:[#allocation2 + $0x38] sm:$0xff]
    %v1114 = vld [vmem:[#allocation2 + $0x40] sm:$0xff]
    %v1115 = vld [vmem:[#allocation2 + $0x48] sm:$0xff]
    %v1116 = vld [vmem:[#allocation2 + $0x50] sm:$0xff]
    %v1117 = vld [vmem:[#allocation2 + $0x58] sm:$0xff]
    %v1118 = vld [vmem:[#allocation2 + $0x60] sm:$0xff]
    %v1119 = vld [vmem:[#allocation2 + $0x68] sm:$0xff]
    %v1120 = vld [vmem:[#allocation2 + $0x70] sm:$0xff]
    %v1121 = vld [vmem:[#allocation2 + $0x78] sm:$0xff]
    %v1122 = vld [vmem:[#allocation2 + $0x80] sm:$0xff]
    %v1123 = vld [vmem:[#allocation2 + $0x88] sm:$0xff]
    %v1124 = vld [vmem:[#allocation2 + $0x90] sm:$0xff]
    %v1125 = vld [vmem:[#allocation2 + $0x98] sm:$0xff]
    %v1126 = vld [vmem:[#allocation2 + $0xa0] sm:$0xff]
    %v1127 = vld [vmem:[#allocation2 + $0xa8] sm:$0xff]
    %v1128 = vld [vmem:[#allocation2 + $0xb0] sm:$0xff]
    %v1129 = vld [vmem:[#allocation2 + $0xb8] sm:$0xff]
    %v1130 = vld [vmem:[#allocation2 + $0xc0] sm:$0xff]
    %v1131 = vld [vmem:[#allocation2 + $0xc8] sm:$0xff]
    %v1132 = vld [vmem:[#allocation2 + $0xd0] sm:$0xff]
    %v1133 = vld [vmem:[#allocation2 + $0xd8] sm:$0xff]
    %v1134 = vadd.f32 %v1106, %v996
    %v1135 = vadd.f32 %v1107, %v999
    %v1136 = vadd.f32 %v1108, %v1004
    %v1137 = vadd.f32 %v1109, %v1007
    %v1138 = vadd.f32 %v1110, %v1012
    %v1139 = vadd.f32 %v1111, %v1015
    %v1140 = vadd.f32 %v1112, %v1020
    %v1141 = vadd.f32 %v1113, %v1023
    %v1142 = vadd.f32 %v1114, %v1028
    %v1143 = vadd.f32 %v1115, %v1031
    %v1144 = vadd.f32 %v1116, %v1036
    %v1145 = vadd.f32 %v1117, %v1039
    %v1146 = vadd.f32 %v1118, %v1044
    %v1147 = vadd.f32 %v1119, %v1047
    %v1148 = vadd.f32 %v1120, %v1052
    %v1149 = vadd.f32 %v1121, %v1055
    %v1150 = vadd.f32 %v1122, %v1060
    %v1151 = vadd.f32 %v1123, %v1063
    %v1152 = vadd.f32 %v1124, %v1068
    %v1153 = vadd.f32 %v1125, %v1071
    %v1154 = vadd.f32 %v1126, %v1076
    %v1155 = vadd.f32 %v1127, %v1079
    %v1156 = vadd.f32 %v1128, %v1084
    %v1157 = vadd.f32 %v1129, %v1087
    %v1158 = vadd.f32 %v1130, %v1092
    %v1159 = vadd.f32 %v1131, %v1095
    %v1160 = vadd.f32 %v1132, %v1100
    %v1161 = vadd.f32 %v1133, %v1103
    %1162 = vst.msk [vmem:[#allocation2] sm:$0xff] %vm230, %v1134
    %1163 = vst.msk [vmem:[#allocation2 + $0x8] sm:$0xff] %vm230, %v1135
    %1164 = vst.msk [vmem:[#allocation2 + $0x10] sm:$0xff] %vm230, %v1136
    %1165 = vst.msk [vmem:[#allocation2 + $0x18] sm:$0xff] %vm230, %v1137
    %1166 = vst.msk [vmem:[#allocation2 + $0x20] sm:$0xff] %vm230, %v1138
    %1167 = vst.msk [vmem:[#allocation2 + $0x28] sm:$0xff] %vm230, %v1139
    %1168 = vst.msk [vmem:[#allocation2 + $0x30] sm:$0xff] %vm230, %v1140
    %1169 = vst.msk [vmem:[#allocation2 + $0x38] sm:$0xff] %vm230, %v1141
    %1170 = vst.msk [vmem:[#allocation2 + $0x40] sm:$0xff] %vm230, %v1142
    %1171 = vst.msk [vmem:[#allocation2 + $0x48] sm:$0xff] %vm230, %v1143
    %1172 = vst.msk [vmem:[#allocation2 + $0x50] sm:$0xff] %vm230, %v1144
    %1173 = vst.msk [vmem:[#allocation2 + $0x58] sm:$0xff] %vm230, %v1145
    %1174 = vst.msk [vmem:[#allocation2 + $0x60] sm:$0xff] %vm230, %v1146
    %1175 = vst.msk [vmem:[#allocation2 + $0x68] sm:$0xff] %vm230, %v1147
    %1176 = vst.msk [vmem:[#allocation2 + $0x70] sm:$0xff] %vm230, %v1148
    %1177 = vst.msk [vmem:[#allocation2 + $0x78] sm:$0xff] %vm230, %v1149
    %1178 = vst.msk [vmem:[#allocation2 + $0x80] sm:$0xff] %vm230, %v1150
    %1179 = vst.msk [vmem:[#allocation2 + $0x88] sm:$0xff] %vm230, %v1151
    %1180 = vst.msk [vmem:[#allocation2 + $0x90] sm:$0xff] %vm230, %v1152
    %1181 = vst.msk [vmem:[#allocation2 + $0x98] sm:$0xff] %vm230, %v1153
    %1182 = vst.msk [vmem:[#allocation2 + $0xa0] sm:$0xff] %vm230, %v1154
    %1183 = vst.msk [vmem:[#allocation2 + $0xa8] sm:$0xff] %vm230, %v1155
    %1184 = vst.msk [vmem:[#allocation2 + $0xb0] sm:$0xff] %vm230, %v1156
    %1185 = vst.msk [vmem:[#allocation2 + $0xb8] sm:$0xff] %vm230, %v1157
    %1186 = vst.msk [vmem:[#allocation2 + $0xc0] sm:$0xff] %vm230, %v1158
    %1187 = vst.msk [vmem:[#allocation2 + $0xc8] sm:$0xff] %vm230, %v1159
    %1188 = vst.msk [vmem:[#allocation2 + $0xd0] sm:$0xff] %vm230, %v1160
    %1189 = vst.msk [vmem:[#allocation2 + $0xd8] sm:$0xff] %vm230, %v1161
    %v1190 = vld [vmem:[%s0] sm:$0xe]
    %v1191 = vld [vmem:[%s0 + $0x4] sm:$0xf]
    %v1192 = vld [vmem:[%s0 + $0x8] sm:$0xf]
    %v1193 = vld [vmem:[%s0 + $0xc] sm:$0xf]
    %v1194 = vld [vmem:[%s0 + $0x10] sm:$0xf]
    %v1195 = vld [vmem:[%s0 + $0x14] sm:$0xf]
    %v1196 = vld [vmem:[%s0 + $0x18] sm:$0xf]
    %v1197 = vld [vmem:[%s0 + $0x1c] sm:$0xf]
    %v1198 = vld [vmem:[%s0 + $0x20] sm:$0xf]
    %v1199 = vld [vmem:[%s0 + $0x24] sm:$0xf]
    %v1200 = vld [vmem:[%s0 + $0x28] sm:$0xf]
    %v1201 = vld [vmem:[%s0 + $0x2c] sm:$0xf]
    %v1202 = vld [vmem:[%s0 + $0x30] sm:$0xf]
    %v1203 = vld [vmem:[%s0 + $0x34] sm:$0xf]
    %v1204 = vld [vmem:[%s0 + $0x38] sm:$0xf]
    %v1205 = vld [vmem:[%s0 + $0x3c] sm:$0xf]
    %v1206 = vld [vmem:[%s0 + $0x40] sm:$0xf]
    %v1207 = vld [vmem:[%s0 + $0x44] sm:$0xf]
    %v1208 = vld [vmem:[%s0 + $0x48] sm:$0xf]
    %v1209 = vld [vmem:[%s0 + $0x4c] sm:$0xf]
    %v1210 = vld [vmem:[%s0 + $0x50] sm:$0xf]
    %v1211 = vld [vmem:[%s0 + $0x54] sm:$0xf]
    %v1212 = vld [vmem:[%s0 + $0x58] sm:$0xf]
    %v1213 = vld [vmem:[%s0 + $0x5c] sm:$0xf]
    %v1214 = vld [vmem:[%s0 + $0x60] sm:$0xf]
    %v1215 = vld [vmem:[%s0 + $0x64] sm:$0xf]
    %v1216 = vld [vmem:[%s0 + $0x68] sm:$0xf]
    %v1217 = vld [vmem:[%s0 + $0x6c] sm:$0xf]
    %v1218 = vld [vmem:[%s0 + $0x70] sm:$0x1]
    %v1219 = vld [vmem:[%s0 + $0x8] sm:$0xe]
    %v1220 = vld [vmem:[%s0 + $0x70] sm:$0xf]
    %v1221 = vld [vmem:[%s0 + $0x74] sm:$0xf]
    %v1222 = vld [vmem:[%s0 + $0x78] sm:$0x1]
    %v1223 = vld [vmem:[%s0 + $0x10] sm:$0xe]
    %v1224 = vld [vmem:[%s0 + $0x78] sm:$0xf]
    %v1225 = vld [vmem:[%s0 + $0x7c] sm:$0xf]
    %v1226 = vld [vmem:[%s0 + $0x80] sm:$0x1]
    %v1256 = vunpack.c.l.b16 %v1190
    %v1257 = vunpack.c.l.b16 %v1191
    %v1258 = vunpack.c.l.b16 %v1192
    %v1259 = vunpack.c.l.b16 %v1193
    %v1260 = vunpack.c.l.b16 %v1194
    %v1261 = vunpack.c.l.b16 %v1195
    %v1262 = vunpack.c.l.b16 %v1196
    %v1263 = vunpack.c.l.b16 %v1197
    %v1264 = vunpack.c.l.b16 %v1198
    %v1265 = vunpack.c.l.b16 %v1199
    %v1266 = vunpack.c.l.b16 %v1200
    %v1267 = vunpack.c.l.b16 %v1201
    %v1268 = vunpack.c.l.b16 %v1202
    %v1269 = vunpack.c.l.b16 %v1203
    %v1270 = vunpack.c.l.b16 %v1204
    %v1271 = vunpack.c.l.b16 %v1205
    %v1272 = vunpack.c.l.b16 %v1206
    %v1273 = vunpack.c.l.b16 %v1207
    %v1274 = vunpack.c.l.b16 %v1208
    %v1275 = vunpack.c.l.b16 %v1209
    %v1276 = vunpack.c.l.b16 %v1210
    %v1277 = vunpack.c.l.b16 %v1211
    %v1278 = vunpack.c.l.b16 %v1212
    %v1279 = vunpack.c.l.b16 %v1213
    %v1280 = vunpack.c.l.b16 %v1214
    %v1281 = vunpack.c.l.b16 %v1215
    %v1282 = vunpack.c.l.b16 %v1216
    %v1283 = vunpack.c.l.b16 %v1217
    %v1284 = vunpack.c.l.b16 %v1218
    %v1285 = vpack.c.b16 %v1257, %v1256
    %v1286 = vpack.c.b16 %v1259, %v1258
    %v1287 = vpack.c.b16 %v1261, %v1260
    %v1288 = vpack.c.b16 %v1263, %v1262
    %v1289 = vpack.c.b16 %v1265, %v1264
    %v1290 = vpack.c.b16 %v1267, %v1266
    %v1291 = vpack.c.b16 %v1269, %v1268
    %v1292 = vpack.c.b16 %v1271, %v1270
    %v1293 = vpack.c.b16 %v1273, %v1272
    %v1294 = vpack.c.b16 %v1275, %v1274
    %v1295 = vpack.c.b16 %v1277, %v1276
    %v1296 = vpack.c.b16 %v1279, %v1278
    %v1297 = vpack.c.b16 %v1281, %v1280
    %v1298 = vpack.c.b16 %v1283, %v1282
    %v1299 = vpack.c.b16 %v1284, %v1284
    %v1304 = vunpack.c.l.b16 %v1219
    %v1305 = vunpack.c.l.b16 %v1220
    %v1306 = vunpack.c.l.b16 %v1221
    %v1307 = vunpack.c.l.b16 %v1222
    %v1308 = vpack.c.b16 %v1259, %v1304
    %v1309 = vpack.c.b16 %v1306, %v1305
    %v1310 = vpack.c.b16 %v1307, %v1307
    %1311 = vrot.lane.b32.xlu0 %v1308, 32
    %v1312 = vpop.permute.xlu0 %1311
    %1313 = vrot.lane.b32.xlu0 %v1287, 32
    %v1314 = vpop.permute.xlu0 %1313
    %1315 = vrot.lane.b32.xlu0 %v1288, 32
    %v1316 = vpop.permute.xlu0 %1315
    %1317 = vrot.lane.b32.xlu0 %v1289, 32
    %v1318 = vpop.permute.xlu0 %1317
    %1319 = vrot.lane.b32.xlu0 %v1290, 32
    %v1320 = vpop.permute.xlu0 %1319
    %1321 = vrot.lane.b32.xlu0 %v1291, 32
    %v1322 = vpop.permute.xlu0 %1321
    %1323 = vrot.lane.b32.xlu0 %v1292, 32
    %v1324 = vpop.permute.xlu0 %1323
    %1325 = vrot.lane.b32.xlu0 %v1293, 32
    %v1326 = vpop.permute.xlu0 %1325
    %1327 = vrot.lane.b32.xlu0 %v1294, 32
    %v1328 = vpop.permute.xlu0 %1327
    %1329 = vrot.lane.b32.xlu0 %v1295, 32
    %v1330 = vpop.permute.xlu0 %1329
    %1331 = vrot.lane.b32.xlu0 %v1296, 32
    %v1332 = vpop.permute.xlu0 %1331
    %1333 = vrot.lane.b32.xlu0 %v1297, 32
    %v1334 = vpop.permute.xlu0 %1333
    %1335 = vrot.lane.b32.xlu0 %v1298, 32
    %v1336 = vpop.permute.xlu0 %1335
    %1337 = vrot.lane.b32.xlu0 %v1309, 32
    %v1338 = vpop.permute.xlu0 %1337
    %1339 = vrot.lane.b32.xlu0 %v1310, 32
    %v1340 = vpop.permute.xlu0 %1339
    %v1345 = vunpack.c.l.b16 %v1223
    %v1346 = vunpack.c.l.b16 %v1224
    %v1347 = vunpack.c.l.b16 %v1225
    %v1348 = vunpack.c.l.b16 %v1226
    %v1349 = vpack.c.b16 %v1261, %v1345
    %v1350 = vpack.c.b16 %v1347, %v1346
    %v1351 = vpack.c.b16 %v1348, %v1348
    %1352 = vrot.lane.b32.xlu0 %v1349, 64
    %v1353 = vpop.permute.xlu0 %1352
    %1354 = vrot.lane.b32.xlu0 %v1288, 64
    %v1355 = vpop.permute.xlu0 %1354
    %1356 = vrot.lane.b32.xlu0 %v1289, 64
    %v1357 = vpop.permute.xlu0 %1356
    %1358 = vrot.lane.b32.xlu0 %v1290, 64
    %v1359 = vpop.permute.xlu0 %1358
    %1360 = vrot.lane.b32.xlu0 %v1291, 64
    %v1361 = vpop.permute.xlu0 %1360
    %1362 = vrot.lane.b32.xlu0 %v1292, 64
    %v1363 = vpop.permute.xlu0 %1362
    %1364 = vrot.lane.b32.xlu0 %v1293, 64
    %v1365 = vpop.permute.xlu0 %1364
    %1366 = vrot.lane.b32.xlu0 %v1294, 64
    %v1367 = vpop.permute.xlu0 %1366
    %1368 = vrot.lane.b32.xlu0 %v1295, 64
    %v1369 = vpop.permute.xlu0 %1368
    %1370 = vrot.lane.b32.xlu0 %v1296, 64
    %v1371 = vpop.permute.xlu0 %1370
    %1372 = vrot.lane.b32.xlu0 %v1297, 64
    %v1373 = vpop.permute.xlu0 %1372
    %1374 = vrot.lane.b32.xlu0 %v1298, 64
    %v1375 = vpop.permute.xlu0 %1374
    %1376 = vrot.lane.b32.xlu0 %v1309, 64
    %v1377 = vpop.permute.xlu0 %1376
    %1378 = vrot.lane.b32.xlu0 %v1350, 64
    %v1379 = vpop.permute.xlu0 %1378
    %1380 = vrot.lane.b32.xlu0 %v1351, 64
    %v1381 = vpop.permute.xlu0 %1380
    %v1384 = vsel %vm187, %v1285, %v1312
    %v1387 = vsel %vm187, %v1286, %v1314
    %v1390 = vsel %vm187, %v1287, %v1316
    %v1393 = vsel %vm187, %v1288, %v1318
    %v1396 = vsel %vm187, %v1289, %v1320
    %v1399 = vsel %vm187, %v1290, %v1322
    %v1402 = vsel %vm187, %v1291, %v1324
    %v1405 = vsel %vm187, %v1292, %v1326
    %v1408 = vsel %vm187, %v1293, %v1328
    %v1411 = vsel %vm187, %v1294, %v1330
    %v1414 = vsel %vm187, %v1295, %v1332
    %v1417 = vsel %vm187, %v1296, %v1334
    %v1420 = vsel %vm187, %v1297, %v1336
    %v1423 = vsel %vm187, %v1298, %v1338
    %v1426 = vsel %vm187, %v1299, %v1340
    %v1428 = vsel %vm230, %v1384, %v1353
    %v1430 = vsel %vm230, %v1387, %v1355
    %v1432 = vsel %vm230, %v1390, %v1357
    %v1434 = vsel %vm230, %v1393, %v1359
    %v1436 = vsel %vm230, %v1396, %v1361
    %v1438 = vsel %vm230, %v1399, %v1363
    %v1440 = vsel %vm230, %v1402, %v1365
    %v1442 = vsel %vm230, %v1405, %v1367
    %v1444 = vsel %vm230, %v1408, %v1369
    %v1446 = vsel %vm230, %v1411, %v1371
    %v1448 = vsel %vm230, %v1414, %v1373
    %v1450 = vsel %vm230, %v1417, %v1375
    %v1452 = vsel %vm230, %v1420, %v1377
    %v1454 = vsel %vm230, %v1423, %v1379
    %v1456 = vsel %vm230, %v1426, %v1381
    %s1457 = scalar_lea.vmem %s1, 96
    %v1458 = vld [vmem:[%s1457] sm:$0xf]
    %v1459 = vld [vmem:[%s1457 + $0x4] sm:$0xf]
    %v1460 = vld [vmem:[%s1457 + $0x8] sm:$0xf]
    %v1461 = vld [vmem:[%s1457 + $0xc] sm:$0xf]
    %v1462 = vld [vmem:[%s1457 + $0x10] sm:$0xf]
    %v1463 = vld [vmem:[%s1457 + $0x14] sm:$0xf]
    %v1464 = vld [vmem:[%s1457 + $0x18] sm:$0xf]
    %v1465 = vld [vmem:[%s1457 + $0x1c] sm:$0xf]
    %v1466 = vld [vmem:[%s1457 + $0x20] sm:$0xf]
    %v1467 = vld [vmem:[%s1457 + $0x24] sm:$0xf]
    %v1468 = vld [vmem:[%s1457 + $0x28] sm:$0xf]
    %v1469 = vld [vmem:[%s1457 + $0x2c] sm:$0xf]
    %vm1485 = vcmask 1046528
    %v1486 = vrot.slane %v1428, 1
    %v1487 = vrot.slane %v1430, 1
    %v1488 = vsel %vm1485, %v1486, %v1487
    %v1489 = vrot.slane %v1432, 1
    %v1490 = vsel %vm1485, %v1487, %v1489
    %v1491 = vrot.slane %v1434, 1
    %v1492 = vsel %vm1485, %v1489, %v1491
    %v1493 = vrot.slane %v1436, 1
    %v1494 = vsel %vm1485, %v1491, %v1493
    %v1495 = vrot.slane %v1438, 1
    %v1496 = vsel %vm1485, %v1493, %v1495
    %v1497 = vrot.slane %v1440, 1
    %v1498 = vsel %vm1485, %v1495, %v1497
    %v1499 = vrot.slane %v1442, 1
    %v1500 = vsel %vm1485, %v1497, %v1499
    %v1501 = vrot.slane %v1444, 1
    %v1502 = vsel %vm1485, %v1499, %v1501
    %v1503 = vrot.slane %v1446, 1
    %v1504 = vsel %vm1485, %v1501, %v1503
    %v1505 = vrot.slane %v1448, 1
    %v1506 = vsel %vm1485, %v1503, %v1505
    %v1507 = vrot.slane %v1450, 1
    %v1508 = vsel %vm1485, %v1505, %v1507
    %v1509 = vrot.slane %v1452, 1
    %v1510 = vsel %vm1485, %v1507, %v1509
    %v1511 = vrot.slane %v1454, 1
    %v1512 = vsel %vm1485, %v1509, %v1511
    %v1513 = vrot.slane %v1456, 1
    %v1514 = vsel %vm1485, %v1511, %v1513
    %v1527 = vunpack.c.l.b16 %v1458
    %v1528 = vunpack.c.l.b16 %v1459
    %v1529 = vunpack.c.l.b16 %v1460
    %v1530 = vunpack.c.l.b16 %v1461
    %v1531 = vunpack.c.l.b16 %v1462
    %v1532 = vunpack.c.l.b16 %v1463
    %v1533 = vunpack.c.l.b16 %v1464
    %v1534 = vunpack.c.l.b16 %v1465
    %v1535 = vunpack.c.l.b16 %v1466
    %v1536 = vunpack.c.l.b16 %v1467
    %v1537 = vunpack.c.l.b16 %v1468
    %v1538 = vunpack.c.l.b16 %v1469
    %v1539 = vpack.c.b16 %v1528, %v1527
    %v1540 = vpack.c.b16 %v1530, %v1529
    %v1541 = vpack.c.b16 %v1532, %v1531
    %v1542 = vpack.c.b16 %v1534, %v1533
    %v1543 = vpack.c.b16 %v1536, %v1535
    %v1544 = vpack.c.b16 %v1538, %v1537
    %v1552 = vsel %vm307, %v1488, 0
    %v1555 = vsel %vm307, %v1490, 0
    %v1558 = vsel %vm307, %v1492, 0
    %v1561 = vsel %vm307, %v1494, 0
    %v1564 = vsel %vm307, %v1496, 0
    %v1567 = vsel %vm307, %v1498, 0
    %v1570 = vsel %vm307, %v1500, 0
    %v1573 = vsel %vm307, %v1502, 0
    %v1576 = vsel %vm307, %v1504, 0
    %v1579 = vsel %vm307, %v1506, 0
    %v1582 = vsel %vm307, %v1508, 0
    %v1585 = vsel %vm307, %v1510, 0
    %v1588 = vsel %vm307, %v1512, 0
    %v1591 = vsel %vm307, %v1514, 0
    %1593 = vmatprep.subr.bf16.mxu0 0
    %1594 = vmatpush1.bf16.msra.mxu0 %v1539
    %1595 = vmatprep.subr.bf16.mxu0 0
    %1596 = vmatpush1.bf16.msra.mxu0 %v1540
    %1597 = vmatprep.subr.bf16.mxu0 0
    %1598 = vmatpush1.bf16.msra.mxu0 %v1541
    %1599 = vmatprep.subr.bf16.mxu0 0
    %1600 = vmatpush1.bf16.msra.mxu0 %v1542
    %1601 = vmatprep.subr.bf16.mxu0 0
    %1602 = vmatpush1.bf16.msra.mxu0 %v1543
    %1603 = vmatprep.subr.bf16.mxu0 0
    %1604 = vmatpush1.bf16.msra.mxu0 %v1544
    %1605 = vmatprep.subr.bf16.mxu0 0
    %1606 = vmatpush1.bf16.msra.mxu0 0
    %1607 = vmatprep.subr.bf16.mxu0 0
    %1608 = vmatpush1.bf16.msra.mxu0 0
    %1609 = vmatprep.subr.bf16.mxu0 0
    %1610 = vmatpush1.bf16.msra.mxu0 0
    %1611 = vmatprep.subr.bf16.mxu0 0
    %1612 = vmatpush1.bf16.msra.mxu0 0
    %1613 = vmatprep.subr.bf16.mxu0 0
    %1614 = vmatpush1.bf16.msra.mxu0 0
    %1615 = vmatprep.subr.bf16.mxu0 0
    %1616 = vmatpush1.bf16.msra.mxu0 0
    %1617 = vmatprep.subr.bf16.mxu0 0
    %1618 = vmatpush1.bf16.msra.mxu0 0
    %1619 = vmatprep.subr.bf16.mxu0 0
    %1620 = vmatpush1.bf16.msra.mxu0 0
    %1621 = vmatprep.subr.bf16.mxu0 0
    %1622 = vmatpush1.bf16.msra.mxu0 0
    %1623 = vmatprep.subr.bf16.mxu0 0
    %1624 = vmatpush1.bf16.msra.mxu0 0
    %1625 = vmatprep.mubr.bf16.mxu0 0
    %1626 = vmatmul.mubr.bf16.gmra.mrb[0].mxu0 %v1552
    %v1627 = vpop.f32.mrb[0].mxu0
    %v1628 = vadd.f32 0.0, %v1627
    %v1629 = vpop.f32.mrb[0].mxu0
    %v1630 = vpop.f32.mrb[0].mxu0
    %v1631 = vadd.f32 0.0, %v1630
    %v1632 = vpop.f32.mrb[0].mxu0
    %1633 = vmatprep.mubr.bf16.mxu0 0
    %1634 = vmatmul.mubr.bf16.gmra.mrb[0].mxu0 %v1555
    %v1635 = vpop.f32.mrb[0].mxu0
    %v1636 = vadd.f32 0.0, %v1635
    %v1637 = vpop.f32.mrb[0].mxu0
    %v1638 = vpop.f32.mrb[0].mxu0
    %v1639 = vadd.f32 0.0, %v1638
    %v1640 = vpop.f32.mrb[0].mxu0
    %1641 = vmatprep.mubr.bf16.mxu0 0
    %1642 = vmatmul.mubr.bf16.gmra.mrb[0].mxu0 %v1558
    %v1643 = vpop.f32.mrb[0].mxu0
    %v1644 = vadd.f32 0.0, %v1643
    %v1645 = vpop.f32.mrb[0].mxu0
    %v1646 = vpop.f32.mrb[0].mxu0
    %v1647 = vadd.f32 0.0, %v1646
    %v1648 = vpop.f32.mrb[0].mxu0
    %1649 = vmatprep.mubr.bf16.mxu0 0
    %1650 = vmatmul.mubr.bf16.gmra.mrb[0].mxu0 %v1561
    %v1651 = vpop.f32.mrb[0].mxu0
    %v1652 = vadd.f32 0.0, %v1651
    %v1653 = vpop.f32.mrb[0].mxu0
    %v1654 = vpop.f32.mrb[0].mxu0
    %v1655 = vadd.f32 0.0, %v1654
    %v1656 = vpop.f32.mrb[0].mxu0
    %1657 = vmatprep.mubr.bf16.mxu0 0
    %1658 = vmatmul.mubr.bf16.gmra.mrb[0].mxu0 %v1564
    %v1659 = vpop.f32.mrb[0].mxu0
    %v1660 = vadd.f32 0.0, %v1659
    %v1661 = vpop.f32.mrb[0].mxu0
    %v1662 = vpop.f32.mrb[0].mxu0
    %v1663 = vadd.f32 0.0, %v1662
    %v1664 = vpop.f32.mrb[0].mxu0
    %1665 = vmatprep.mubr.bf16.mxu0 0
    %1666 = vmatmul.mubr.bf16.gmra.mrb[0].mxu0 %v1567
    %v1667 = vpop.f32.mrb[0].mxu0
    %v1668 = vadd.f32 0.0, %v1667
    %v1669 = vpop.f32.mrb[0].mxu0
    %v1670 = vpop.f32.mrb[0].mxu0
    %v1671 = vadd.f32 0.0, %v1670
    %v1672 = vpop.f32.mrb[0].mxu0
    %1673 = vmatprep.mubr.bf16.mxu0 0
    %1674 = vmatmul.mubr.bf16.gmra.mrb[0].mxu0 %v1570
    %v1675 = vpop.f32.mrb[0].mxu0
    %v1676 = vadd.f32 0.0, %v1675
    %v1677 = vpop.f32.mrb[0].mxu0
    %v1678 = vpop.f32.mrb[0].mxu0
    %v1679 = vadd.f32 0.0, %v1678
    %v1680 = vpop.f32.mrb[0].mxu0
    %1681 = vmatprep.mubr.bf16.mxu0 0
    %1682 = vmatmul.mubr.bf16.gmra.mrb[0].mxu0 %v1573
    %v1683 = vpop.f32.mrb[0].mxu0
    %v1684 = vadd.f32 0.0, %v1683
    %v1685 = vpop.f32.mrb[0].mxu0
    %v1686 = vpop.f32.mrb[0].mxu0
    %v1687 = vadd.f32 0.0, %v1686
    %v1688 = vpop.f32.mrb[0].mxu0
    %1689 = vmatprep.mubr.bf16.mxu0 0
    %1690 = vmatmul.mubr.bf16.gmra.mrb[0].mxu0 %v1576
    %v1691 = vpop.f32.mrb[0].mxu0
    %v1692 = vadd.f32 0.0, %v1691
    %v1693 = vpop.f32.mrb[0].mxu0
    %v1694 = vpop.f32.mrb[0].mxu0
    %v1695 = vadd.f32 0.0, %v1694
    %v1696 = vpop.f32.mrb[0].mxu0
    %1697 = vmatprep.mubr.bf16.mxu0 0
    %1698 = vmatmul.mubr.bf16.gmra.mrb[0].mxu0 %v1579
    %v1699 = vpop.f32.mrb[0].mxu0
    %v1700 = vadd.f32 0.0, %v1699
    %v1701 = vpop.f32.mrb[0].mxu0
    %v1702 = vpop.f32.mrb[0].mxu0
    %v1703 = vadd.f32 0.0, %v1702
    %v1704 = vpop.f32.mrb[0].mxu0
    %1705 = vmatprep.mubr.bf16.mxu0 0
    %1706 = vmatmul.mubr.bf16.gmra.mrb[0].mxu0 %v1582
    %v1707 = vpop.f32.mrb[0].mxu0
    %v1708 = vadd.f32 0.0, %v1707
    %v1709 = vpop.f32.mrb[0].mxu0
    %v1710 = vpop.f32.mrb[0].mxu0
    %v1711 = vadd.f32 0.0, %v1710
    %v1712 = vpop.f32.mrb[0].mxu0
    %1713 = vmatprep.mubr.bf16.mxu0 0
    %1714 = vmatmul.mubr.bf16.gmra.mrb[0].mxu0 %v1585
    %v1715 = vpop.f32.mrb[0].mxu0
    %v1716 = vadd.f32 0.0, %v1715
    %v1717 = vpop.f32.mrb[0].mxu0
    %v1718 = vpop.f32.mrb[0].mxu0
    %v1719 = vadd.f32 0.0, %v1718
    %v1720 = vpop.f32.mrb[0].mxu0
    %1721 = vmatprep.mubr.bf16.mxu0 0
    %1722 = vmatmul.mubr.bf16.gmra.mrb[0].mxu0 %v1588
    %v1723 = vpop.f32.mrb[0].mxu0
    %v1724 = vadd.f32 0.0, %v1723
    %v1725 = vpop.f32.mrb[0].mxu0
    %v1726 = vpop.f32.mrb[0].mxu0
    %v1727 = vadd.f32 0.0, %v1726
    %v1728 = vpop.f32.mrb[0].mxu0
    %1729 = vmatprep.mubr.bf16.mxu0 0
    %1730 = vmatmul.mubr.bf16.gmra.mrb[0].mxu0 %v1591
    %v1731 = vpop.f32.mrb[0].mxu0
    %v1732 = vadd.f32 0.0, %v1731
    %v1733 = vpop.f32.mrb[0].mxu0
    %v1734 = vpop.f32.mrb[0].mxu0
    %v1735 = vadd.f32 0.0, %v1734
    %v1736 = vpop.f32.mrb[0].mxu0
    %1737 = vdwg.mxu0
    %v1738 = vld [vmem:[#allocation2] sm:$0xff]
    %v1739 = vld [vmem:[#allocation2 + $0x8] sm:$0xff]
    %v1740 = vld [vmem:[#allocation2 + $0x10] sm:$0xff]
    %v1741 = vld [vmem:[#allocation2 + $0x18] sm:$0xff]
    %v1742 = vld [vmem:[#allocation2 + $0x20] sm:$0xff]
    %v1743 = vld [vmem:[#allocation2 + $0x28] sm:$0xff]
    %v1744 = vld [vmem:[#allocation2 + $0x30] sm:$0xff]
    %v1745 = vld [vmem:[#allocation2 + $0x38] sm:$0xff]
    %v1746 = vld [vmem:[#allocation2 + $0x40] sm:$0xff]
    %v1747 = vld [vmem:[#allocation2 + $0x48] sm:$0xff]
    %v1748 = vld [vmem:[#allocation2 + $0x50] sm:$0xff]
    %v1749 = vld [vmem:[#allocation2 + $0x58] sm:$0xff]
    %v1750 = vld [vmem:[#allocation2 + $0x60] sm:$0xff]
    %v1751 = vld [vmem:[#allocation2 + $0x68] sm:$0xff]
    %v1752 = vld [vmem:[#allocation2 + $0x70] sm:$0xff]
    %v1753 = vld [vmem:[#allocation2 + $0x78] sm:$0xff]
    %v1754 = vld [vmem:[#allocation2 + $0x80] sm:$0xff]
    %v1755 = vld [vmem:[#allocation2 + $0x88] sm:$0xff]
    %v1756 = vld [vmem:[#allocation2 + $0x90] sm:$0xff]
    %v1757 = vld [vmem:[#allocation2 + $0x98] sm:$0xff]
    %v1758 = vld [vmem:[#allocation2 + $0xa0] sm:$0xff]
    %v1759 = vld [vmem:[#allocation2 + $0xa8] sm:$0xff]
    %v1760 = vld [vmem:[#allocation2 + $0xb0] sm:$0xff]
    %v1761 = vld [vmem:[#allocation2 + $0xb8] sm:$0xff]
    %v1762 = vld [vmem:[#allocation2 + $0xc0] sm:$0xff]
    %v1763 = vld [vmem:[#allocation2 + $0xc8] sm:$0xff]
    %v1764 = vld [vmem:[#allocation2 + $0xd0] sm:$0xff]
    %v1765 = vld [vmem:[#allocation2 + $0xd8] sm:$0xff]
    %v1766 = vadd.f32 %v1738, %v1628
    %v1767 = vadd.f32 %v1739, %v1631
    %v1768 = vadd.f32 %v1740, %v1636
    %v1769 = vadd.f32 %v1741, %v1639
    %v1770 = vadd.f32 %v1742, %v1644
    %v1771 = vadd.f32 %v1743, %v1647
    %v1772 = vadd.f32 %v1744, %v1652
    %v1773 = vadd.f32 %v1745, %v1655
    %v1774 = vadd.f32 %v1746, %v1660
    %v1775 = vadd.f32 %v1747, %v1663
    %v1776 = vadd.f32 %v1748, %v1668
    %v1777 = vadd.f32 %v1749, %v1671
    %v1778 = vadd.f32 %v1750, %v1676
    %v1779 = vadd.f32 %v1751, %v1679
    %v1780 = vadd.f32 %v1752, %v1684
    %v1781 = vadd.f32 %v1753, %v1687
    %v1782 = vadd.f32 %v1754, %v1692
    %v1783 = vadd.f32 %v1755, %v1695
    %v1784 = vadd.f32 %v1756, %v1700
    %v1785 = vadd.f32 %v1757, %v1703
    %v1786 = vadd.f32 %v1758, %v1708
    %v1787 = vadd.f32 %v1759, %v1711
    %v1788 = vadd.f32 %v1760, %v1716
    %v1789 = vadd.f32 %v1761, %v1719
    %v1790 = vadd.f32 %v1762, %v1724
    %v1791 = vadd.f32 %v1763, %v1727
    %v1792 = vadd.f32 %v1764, %v1732
    %v1793 = vadd.f32 %v1765, %v1735
    %1794 = vst.msk [vmem:[#allocation2] sm:$0xff] %vm230, %v1766
    %1795 = vst.msk [vmem:[#allocation2 + $0x8] sm:$0xff] %vm230, %v1767
    %1796 = vst.msk [vmem:[#allocation2 + $0x10] sm:$0xff] %vm230, %v1768
    %1797 = vst.msk [vmem:[#allocation2 + $0x18] sm:$0xff] %vm230, %v1769
    %1798 = vst.msk [vmem:[#allocation2 + $0x20] sm:$0xff] %vm230, %v1770
    %1799 = vst.msk [vmem:[#allocation2 + $0x28] sm:$0xff] %vm230, %v1771
    %1800 = vst.msk [vmem:[#allocation2 + $0x30] sm:$0xff] %vm230, %v1772
    %1801 = vst.msk [vmem:[#allocation2 + $0x38] sm:$0xff] %vm230, %v1773
    %1802 = vst.msk [vmem:[#allocation2 + $0x40] sm:$0xff] %vm230, %v1774
    %1803 = vst.msk [vmem:[#allocation2 + $0x48] sm:$0xff] %vm230, %v1775
    %1804 = vst.msk [vmem:[#allocation2 + $0x50] sm:$0xff] %vm230, %v1776
    %1805 = vst.msk [vmem:[#allocation2 + $0x58] sm:$0xff] %vm230, %v1777
    %1806 = vst.msk [vmem:[#allocation2 + $0x60] sm:$0xff] %vm230, %v1778
    %1807 = vst.msk [vmem:[#allocation2 + $0x68] sm:$0xff] %vm230, %v1779
    %1808 = vst.msk [vmem:[#allocation2 + $0x70] sm:$0xff] %vm230, %v1780
    %1809 = vst.msk [vmem:[#allocation2 + $0x78] sm:$0xff] %vm230, %v1781
    %1810 = vst.msk [vmem:[#allocation2 + $0x80] sm:$0xff] %vm230, %v1782
    %1811 = vst.msk [vmem:[#allocation2 + $0x88] sm:$0xff] %vm230, %v1783
    %1812 = vst.msk [vmem:[#allocation2 + $0x90] sm:$0xff] %vm230, %v1784
    %1813 = vst.msk [vmem:[#allocation2 + $0x98] sm:$0xff] %vm230, %v1785
    %1814 = vst.msk [vmem:[#allocation2 + $0xa0] sm:$0xff] %vm230, %v1786
    %1815 = vst.msk [vmem:[#allocation2 + $0xa8] sm:$0xff] %vm230, %v1787
    %1816 = vst.msk [vmem:[#allocation2 + $0xb0] sm:$0xff] %vm230, %v1788
    %1817 = vst.msk [vmem:[#allocation2 + $0xb8] sm:$0xff] %vm230, %v1789
    %1818 = vst.msk [vmem:[#allocation2 + $0xc0] sm:$0xff] %vm230, %v1790
    %1819 = vst.msk [vmem:[#allocation2 + $0xc8] sm:$0xff] %vm230, %v1791
    %1820 = vst.msk [vmem:[#allocation2 + $0xd0] sm:$0xff] %vm230, %v1792
    %1821 = vst.msk [vmem:[#allocation2 + $0xd8] sm:$0xff] %vm230, %v1793
    %v1822 = vld [vmem:[#allocation2] sm:$0xff]
    %v1823 = vld [vmem:[#allocation2 + $0x8] sm:$0xff]
    %v1824 = vld [vmem:[#allocation2 + $0x10] sm:$0xff]
    %v1825 = vld [vmem:[#allocation2 + $0x18] sm:$0xff]
    %v1826 = vld [vmem:[#allocation2 + $0x20] sm:$0xff]
    %v1827 = vld [vmem:[#allocation2 + $0x28] sm:$0xff]
    %v1828 = vld [vmem:[#allocation2 + $0x30] sm:$0xff]
    %v1829 = vld [vmem:[#allocation2 + $0x38] sm:$0xff]
    %v1830 = vld [vmem:[#allocation2 + $0x40] sm:$0xff]
    %v1831 = vld [vmem:[#allocation2 + $0x48] sm:$0xff]
    %v1832 = vld [vmem:[#allocation2 + $0x50] sm:$0xff]
    %v1833 = vld [vmem:[#allocation2 + $0x58] sm:$0xff]
    %v1834 = vld [vmem:[#allocation2 + $0x60] sm:$0xff]
    %v1835 = vld [vmem:[#allocation2 + $0x68] sm:$0xff]
    %v1836 = vld [vmem:[#allocation2 + $0x70] sm:$0xff]
    %v1837 = vld [vmem:[#allocation2 + $0x78] sm:$0xff]
    %v1838 = vld [vmem:[#allocation2 + $0x80] sm:$0xff]
    %v1839 = vld [vmem:[#allocation2 + $0x88] sm:$0xff]
    %v1840 = vld [vmem:[#allocation2 + $0x90] sm:$0xff]
    %v1841 = vld [vmem:[#allocation2 + $0x98] sm:$0xff]
    %v1842 = vld [vmem:[#allocation2 + $0xa0] sm:$0xff]
    %v1843 = vld [vmem:[#allocation2 + $0xa8] sm:$0xff]
    %v1844 = vld [vmem:[#allocation2 + $0xb0] sm:$0xff]
    %v1845 = vld [vmem:[#allocation2 + $0xb8] sm:$0xff]
    %v1846 = vld [vmem:[#allocation2 + $0xc0] sm:$0xff]
    %v1847 = vld [vmem:[#allocation2 + $0xc8] sm:$0xff]
    %v1848 = vld [vmem:[#allocation2 + $0xd0] sm:$0xff]
    %v1849 = vld [vmem:[#allocation2 + $0xd8] sm:$0xff]
    %v1850 = vld [vmem:[%s2] sm:$0x1]
    %v1852 = vlaneseq
    %v1853 = vshrl.u32 %v1852, 7
    %v1854 = vsub.s32 0, %v1853
    %v1855 = vrot.slane %v1850, %v1854
    %v1857 = vadd.f32 %v1822, %v1855
    %v1858 = vadd.f32 %v1823, %v1855
    %v1859 = vadd.f32 %v1824, %v1855
    %v1860 = vadd.f32 %v1825, %v1855
    %v1861 = vadd.f32 %v1826, %v1855
    %v1862 = vadd.f32 %v1827, %v1855
    %v1863 = vadd.f32 %v1828, %v1855
    %v1864 = vadd.f32 %v1829, %v1855
    %v1865 = vadd.f32 %v1830, %v1855
    %v1866 = vadd.f32 %v1831, %v1855
    %v1867 = vadd.f32 %v1832, %v1855
    %v1868 = vadd.f32 %v1833, %v1855
    %v1869 = vadd.f32 %v1834, %v1855
    %v1870 = vadd.f32 %v1835, %v1855
    %v1871 = vadd.f32 %v1836, %v1855
    %v1872 = vadd.f32 %v1837, %v1855
    %v1873 = vadd.f32 %v1838, %v1855
    %v1874 = vadd.f32 %v1839, %v1855
    %v1875 = vadd.f32 %v1840, %v1855
    %v1876 = vadd.f32 %v1841, %v1855
    %v1877 = vadd.f32 %v1842, %v1855
    %v1878 = vadd.f32 %v1843, %v1855
    %v1879 = vadd.f32 %v1844, %v1855
    %v1880 = vadd.f32 %v1845, %v1855
    %v1881 = vadd.f32 %v1846, %v1855
    %v1882 = vadd.f32 %v1847, %v1855
    %v1883 = vadd.f32 %v1848, %v1855
    %v1884 = vadd.f32 %v1849, %v1855
    %v1885 = vld [vmem:[%s3] sm:$0xf]
    %v1886 = vld [vmem:[%s3 + $0x4] sm:$0x7]
    %v1887 = vld [vmem:[%s3 + $0x8] sm:$0xf]
    %v1888 = vld [vmem:[%s3 + $0xc] sm:$0x7]
    %v1889 = vld [vmem:[%s3 + $0x10] sm:$0xf]
    %v1890 = vld [vmem:[%s3 + $0x14] sm:$0x7]
    %v1891 = vld [vmem:[%s3 + $0x18] sm:$0xf]
    %v1892 = vld [vmem:[%s3 + $0x1c] sm:$0x7]
    %v1893 = vld [vmem:[%s3 + $0x20] sm:$0xf]
    %v1894 = vld [vmem:[%s3 + $0x24] sm:$0x7]
    %v1895 = vld [vmem:[%s3 + $0x28] sm:$0xf]
    %v1896 = vld [vmem:[%s3 + $0x2c] sm:$0x7]
    %v1897 = vld [vmem:[%s3 + $0x30] sm:$0xf]
    %v1898 = vld [vmem:[%s3 + $0x34] sm:$0x7]
    %v1899 = vld [vmem:[%s3 + $0x38] sm:$0xf]
    %v1900 = vld [vmem:[%s3 + $0x3c] sm:$0x7]
    %v1901 = vld [vmem:[%s3 + $0x40] sm:$0xf]
    %v1902 = vld [vmem:[%s3 + $0x44] sm:$0x7]
    %v1903 = vld [vmem:[%s3 + $0x48] sm:$0xf]
    %v1904 = vld [vmem:[%s3 + $0x4c] sm:$0x7]
    %v1905 = vld [vmem:[%s3 + $0x50] sm:$0xf]
    %v1906 = vld [vmem:[%s3 + $0x54] sm:$0x7]
    %v1907 = vld [vmem:[%s3 + $0x58] sm:$0xf]
    %v1908 = vld [vmem:[%s3 + $0x5c] sm:$0x7]
    %v1909 = vld [vmem:[%s3 + $0x60] sm:$0xf]
    %v1910 = vld [vmem:[%s3 + $0x64] sm:$0x7]
    %v1911 = vld [vmem:[%s3 + $0x68] sm:$0xf]
    %v1912 = vld [vmem:[%s3 + $0x6c] sm:$0x7]
    %v1913 = vunpack.c.l.bf16 %v1885
    %v1914 = vunpack.c.l.bf16 %v1886
    %v1915 = vunpack.c.l.bf16 %v1887
    %v1916 = vunpack.c.l.bf16 %v1888
    %v1917 = vunpack.c.l.bf16 %v1889
    %v1918 = vunpack.c.l.bf16 %v1890
    %v1919 = vunpack.c.l.bf16 %v1891
    %v1920 = vunpack.c.l.bf16 %v1892
    %v1921 = vunpack.c.l.bf16 %v1893
    %v1922 = vunpack.c.l.bf16 %v1894
    %v1923 = vunpack.c.l.bf16 %v1895
    %v1924 = vunpack.c.l.bf16 %v1896
    %v1925 = vunpack.c.l.bf16 %v1897
    %v1926 = vunpack.c.l.bf16 %v1898
    %v1927 = vunpack.c.l.bf16 %v1899
    %v1928 = vunpack.c.l.bf16 %v1900
    %v1929 = vunpack.c.l.bf16 %v1901
    %v1930 = vunpack.c.l.bf16 %v1902
    %v1931 = vunpack.c.l.bf16 %v1903
    %v1932 = vunpack.c.l.bf16 %v1904
    %v1933 = vunpack.c.l.bf16 %v1905
    %v1934 = vunpack.c.l.bf16 %v1906
    %v1935 = vunpack.c.l.bf16 %v1907
    %v1936 = vunpack.c.l.bf16 %v1908
    %v1937 = vunpack.c.l.bf16 %v1909
    %v1938 = vunpack.c.l.bf16 %v1910
    %v1939 = vunpack.c.l.bf16 %v1911
    %v1940 = vunpack.c.l.bf16 %v1912
    %v1941 = vadd.f32 %v1857, %v1913
    %v1942 = vadd.f32 %v1858, %v1914
    %v1943 = vadd.f32 %v1859, %v1915
    %v1944 = vadd.f32 %v1860, %v1916
    %v1945 = vadd.f32 %v1861, %v1917
    %v1946 = vadd.f32 %v1862, %v1918
    %v1947 = vadd.f32 %v1863, %v1919
    %v1948 = vadd.f32 %v1864, %v1920
    %v1949 = vadd.f32 %v1865, %v1921
    %v1950 = vadd.f32 %v1866, %v1922
    %v1951 = vadd.f32 %v1867, %v1923
    %v1952 = vadd.f32 %v1868, %v1924
    %v1953 = vadd.f32 %v1869, %v1925
    %v1954 = vadd.f32 %v1870, %v1926
    %v1955 = vadd.f32 %v1871, %v1927
    %v1956 = vadd.f32 %v1872, %v1928
    %v1957 = vadd.f32 %v1873, %v1929
    %v1958 = vadd.f32 %v1874, %v1930
    %v1959 = vadd.f32 %v1875, %v1931
    %v1960 = vadd.f32 %v1876, %v1932
    %v1961 = vadd.f32 %v1877, %v1933
    %v1962 = vadd.f32 %v1878, %v1934
    %v1963 = vadd.f32 %v1879, %v1935
    %v1964 = vadd.f32 %v1880, %v1936
    %v1965 = vadd.f32 %v1881, %v1937
    %v1966 = vadd.f32 %v1882, %v1938
    %v1967 = vadd.f32 %v1883, %v1939
    %v1968 = vadd.f32 %v1884, %v1940
    %v1969 = vmax.f32 %v1941, 0.0
    %v1970 = vmax.f32 %v1942, 0.0
    %v1971 = vmax.f32 %v1943, 0.0
    %v1972 = vmax.f32 %v1944, 0.0
    %v1973 = vmax.f32 %v1945, 0.0
    %v1974 = vmax.f32 %v1946, 0.0
    %v1975 = vmax.f32 %v1947, 0.0
    %v1976 = vmax.f32 %v1948, 0.0
    %v1977 = vmax.f32 %v1949, 0.0
    %v1978 = vmax.f32 %v1950, 0.0
    %v1979 = vmax.f32 %v1951, 0.0
    %v1980 = vmax.f32 %v1952, 0.0
    %v1981 = vmax.f32 %v1953, 0.0
    %v1982 = vmax.f32 %v1954, 0.0
    %v1983 = vmax.f32 %v1955, 0.0
    %v1984 = vmax.f32 %v1956, 0.0
    %v1985 = vmax.f32 %v1957, 0.0
    %v1986 = vmax.f32 %v1958, 0.0
    %v1987 = vmax.f32 %v1959, 0.0
    %v1988 = vmax.f32 %v1960, 0.0
    %v1989 = vmax.f32 %v1961, 0.0
    %v1990 = vmax.f32 %v1962, 0.0
    %v1991 = vmax.f32 %v1963, 0.0
    %v1992 = vmax.f32 %v1964, 0.0
    %v1993 = vmax.f32 %v1965, 0.0
    %v1994 = vmax.f32 %v1966, 0.0
    %v1995 = vmax.f32 %v1967, 0.0
    %v1996 = vmax.f32 %v1968, 0.0
    %v1997 = vpack.c.bf16 %v1970, %v1969
    %v1998 = vpack.c.bf16 %v1972, %v1971
    %v1999 = vpack.c.bf16 %v1974, %v1973
    %v2000 = vpack.c.bf16 %v1976, %v1975
    %v2001 = vpack.c.bf16 %v1978, %v1977
    %v2002 = vpack.c.bf16 %v1980, %v1979
    %v2003 = vpack.c.bf16 %v1982, %v1981
    %v2004 = vpack.c.bf16 %v1984, %v1983
    %v2005 = vpack.c.bf16 %v1986, %v1985
    %v2006 = vpack.c.bf16 %v1988, %v1987
    %v2007 = vpack.c.bf16 %v1990, %v1989
    %v2008 = vpack.c.bf16 %v1992, %v1991
    %v2009 = vpack.c.bf16 %v1994, %v1993
    %v2010 = vpack.c.bf16 %v1996, %v1995
    %v2025 = vunpack.c.l.b16 %v1997
    %v2026 = vunpack.c.h.b16 %v1997
    %v2027 = vunpack.c.l.b16 %v1998
    %v2028 = vunpack.c.h.b16 %v1998
    %v2029 = vunpack.c.l.b16 %v1999
    %v2030 = vunpack.c.h.b16 %v1999
    %v2031 = vunpack.c.l.b16 %v2000
    %v2032 = vunpack.c.h.b16 %v2000
    %v2033 = vunpack.c.l.b16 %v2001
    %v2034 = vunpack.c.h.b16 %v2001
    %v2035 = vunpack.c.l.b16 %v2002
    %v2036 = vunpack.c.h.b16 %v2002
    %v2037 = vunpack.c.l.b16 %v2003
    %v2038 = vunpack.c.h.b16 %v2003
    %v2039 = vunpack.c.l.b16 %v2004
    %v2040 = vunpack.c.h.b16 %v2004
    %v2041 = vunpack.c.l.b16 %v2005
    %v2042 = vunpack.c.h.b16 %v2005
    %v2043 = vunpack.c.l.b16 %v2006
    %v2044 = vunpack.c.h.b16 %v2006
    %v2045 = vunpack.c.l.b16 %v2007
    %v2046 = vunpack.c.h.b16 %v2007
    %v2047 = vunpack.c.l.b16 %v2008
    %v2048 = vunpack.c.h.b16 %v2008
    %v2049 = vunpack.c.l.b16 %v2009
    %v2050 = vunpack.c.h.b16 %v2009
    %v2051 = vunpack.c.l.b16 %v2010
    %v2052 = vunpack.c.h.b16 %v2010
    %v2053 = vpack.c.b16 %v2025, %v2025
    %v2054 = vpack.c.b16 %v2026, %v2026
    %v2055 = vpack.c.b16 %v2027, %v2027
    %v2056 = vpack.c.b16 %v2028, %v2028
    %v2057 = vpack.c.b16 %v2029, %v2029
    %v2058 = vpack.c.b16 %v2030, %v2030
    %v2059 = vpack.c.b16 %v2031, %v2031
    %v2060 = vpack.c.b16 %v2032, %v2032
    %v2061 = vpack.c.b16 %v2033, %v2033
    %v2062 = vpack.c.b16 %v2034, %v2034
    %v2063 = vpack.c.b16 %v2035, %v2035
    %v2064 = vpack.c.b16 %v2036, %v2036
    %v2065 = vpack.c.b16 %v2037, %v2037
    %v2066 = vpack.c.b16 %v2038, %v2038
    %v2067 = vpack.c.b16 %v2039, %v2039
    %v2068 = vpack.c.b16 %v2040, %v2040
    %v2069 = vpack.c.b16 %v2041, %v2041
    %v2070 = vpack.c.b16 %v2042, %v2042
    %v2071 = vpack.c.b16 %v2043, %v2043
    %v2072 = vpack.c.b16 %v2044, %v2044
    %v2073 = vpack.c.b16 %v2045, %v2045
    %v2074 = vpack.c.b16 %v2046, %v2046
    %v2075 = vpack.c.b16 %v2047, %v2047
    %v2076 = vpack.c.b16 %v2048, %v2048
    %v2077 = vpack.c.b16 %v2049, %v2049
    %v2078 = vpack.c.b16 %v2050, %v2050
    %v2079 = vpack.c.b16 %v2051, %v2051
    %v2080 = vpack.c.b16 %v2052, %v2052
    %vm2109 = vcmask 519168
    %2110 = vst.msk [vmem:[#allocation3] sm:$0xf] %vm2109, %v2053
    %vm2111 = vcmask 518144
    %2112 = vst.msk [vmem:[#allocation3 + $0x4] sm:$0x7] %vm2111, %v2054
    %2113 = vst.msk [vmem:[#allocation3 + $0x8] sm:$0xf] %vm2109, %v2055
    %2114 = vst.msk [vmem:[#allocation3 + $0xc] sm:$0x7] %vm2111, %v2056
    %2115 = vst.msk [vmem:[#allocation3 + $0x10] sm:$0xf] %vm2109, %v2057
    %2116 = vst.msk [vmem:[#allocation3 + $0x14] sm:$0x7] %vm2111, %v2058
    %2117 = vst.msk [vmem:[#allocation3 + $0x18] sm:$0xf] %vm2109, %v2059
    %2118 = vst.msk [vmem:[#allocation3 + $0x1c] sm:$0x7] %vm2111, %v2060
    %2119 = vst.msk [vmem:[#allocation3 + $0x20] sm:$0xf] %vm2109, %v2061
    %2120 = vst.msk [vmem:[#allocation3 + $0x24] sm:$0x7] %vm2111, %v2062
    %2121 = vst.msk [vmem:[#allocation3 + $0x28] sm:$0xf] %vm2109, %v2063
    %2122 = vst.msk [vmem:[#allocation3 + $0x2c] sm:$0x7] %vm2111, %v2064
    %2123 = vst.msk [vmem:[#allocation3 + $0x30] sm:$0xf] %vm2109, %v2065
    %2124 = vst.msk [vmem:[#allocation3 + $0x34] sm:$0x7] %vm2111, %v2066
    %2125 = vst.msk [vmem:[#allocation3 + $0x38] sm:$0xf] %vm2109, %v2067
    %2126 = vst.msk [vmem:[#allocation3 + $0x3c] sm:$0x7] %vm2111, %v2068
    %2127 = vst.msk [vmem:[#allocation3 + $0x40] sm:$0xf] %vm2109, %v2069
    %2128 = vst.msk [vmem:[#allocation3 + $0x44] sm:$0x7] %vm2111, %v2070
    %2129 = vst.msk [vmem:[#allocation3 + $0x48] sm:$0xf] %vm2109, %v2071
    %2130 = vst.msk [vmem:[#allocation3 + $0x4c] sm:$0x7] %vm2111, %v2072
    %2131 = vst.msk [vmem:[#allocation3 + $0x50] sm:$0xf] %vm2109, %v2073
    %2132 = vst.msk [vmem:[#allocation3 + $0x54] sm:$0x7] %vm2111, %v2074
    %2133 = vst.msk [vmem:[#allocation3 + $0x58] sm:$0xf] %vm2109, %v2075
    %2134 = vst.msk [vmem:[#allocation3 + $0x5c] sm:$0x7] %vm2111, %v2076
    %2135 = vst.msk [vmem:[#allocation3 + $0x60] sm:$0xf] %vm2109, %v2077
    %2136 = vst.msk [vmem:[#allocation3 + $0x64] sm:$0x7] %vm2111, %v2078
    %2137 = vst.msk [vmem:[#allocation3 + $0x68] sm:$0xf] %vm2109, %v2079
    %2138 = vst.msk [vmem:[#allocation3 + $0x6c] sm:$0x7] %vm2111, %v2080
    // Predicated region
    $region18: #{_lambda_.1} parent=1 // pred_check
      _
    $region19: #{_lambda_.1} parent=1 // pred_check_branch
      %2140 = sbr.rel (0) target = $region21
    $region20: #{_lambda_.1} parent=1 // pred_region
      %s2142 = ssub.s32 1792, 1792
      %2143 = vsyncadd [#allocation4], %s2142
      %s2144 = sshll.u32 [#allocation3], 4
      %s2145 = int_to_ptr.vmem [resolvable:$true] %s2144
      %2150 = dma.vmem_to_hbm [thread:$0]  %s2145, 1792, %s4, [#allocation4], 64, 64, 4
    $region21: #{_lambda_.1} parent=1 // pred_fallthru
      _
    // Predicated region
    $region22: #{_lambda_.1} parent=1 // pred_check
      _
    $region23: #{_lambda_.1} parent=1 // pred_check_branch
      %2152 = sbr.rel (0) target = $region25
    $region24: #{_lambda_.1} parent=1 // pred_region
      %2153 = dma.done [#allocation4], 1792
    $region25: #{_lambda_.1} parent=1 // pred_fallthru
      _
    %2154 = vsyncpa [#allocation4], 1

</llo_original>
